<compile_context>
chip_gen: v5e
topology: v5e:2x2
jax: 0.10.0
libtpu: 0.0.40
codegen_flags: <defaults>
</compile_context>

<pallas_src>
import jax
import jax.numpy as jnp
from jax.experimental import pallas as pl
from jax.experimental.pallas import tpu as pltpu

VMEM = pltpu.MemorySpace.VMEM


def _round_up(v, m):
    return ((v + m - 1) // m) * m


# ----------------------------- fused Pallas kernel -----------------------------

def _gcn_kernel(src_ref, tgt_ref, ew_ref, x_ref,
                w1_ref, b1_ref, w2_ref, b2_ref, w3_ref, b3_ref, o_ref):
    n = x_ref.shape[0]          # padded node count (multiple of 128)
    e = src_ref.shape[0]        # padded edge count (multiple of 128)

    # ---- build the (un-normalized) adjacency once, reuse for all 3 layers ----
    # S[e, j] = 1 if src[e] == j (pre-existing self-loops and padded edges are
    # zeroed via ew, matching PyG's add_remaining_self_loops);
    # T[i, e] = 1 if tgt[e] == i.  bf16 one-hots are exact.
    S = ((src_ref[...] == jax.lax.broadcasted_iota(jnp.int32, (e, n), 1))
         .astype(jnp.bfloat16) * ew_ref[...].astype(jnp.bfloat16))
    T = (tgt_ref[...] == jax.lax.broadcasted_iota(jnp.int32, (n, e), 0)
         ).astype(jnp.bfloat16)
    # adj[i, j] = number of (non-self-loop) edges j -> i.  bf16 inputs, f32
    # accumulation -> exact small-integer counts.
    adj_f32 = jnp.dot(T, S, preferred_element_type=jnp.float32)
    # Self-loops handled analytically (no (n,n) eye): deg = rowsum + 1.
    deg = jnp.sum(adj_f32, axis=1, keepdims=True) + 1.0      # (n, 1), >= 1
    dinv = jax.lax.rsqrt(deg)                                 # D^{-1/2}
    dinv2 = dinv * dinv                                       # self-loop weight
    adj = adj_f32.astype(jnp.bfloat16)                        # reused bf16 blob

    def conv(h, w_ref, b_ref):
        # GCNConv: lin(h) -> symmetric-normalized aggregation (+ analytic
        # self-loop term) -> + bias.  MXU dots use bf16 operands / f32 acc.
        hw = jnp.dot(h.astype(jnp.bfloat16), w_ref[...].astype(jnp.bfloat16),
                     preferred_element_type=jnp.float32)
        agg = dinv * jnp.dot(adj, (dinv * hw).astype(jnp.bfloat16),
                             preferred_element_type=jnp.float32)
        return agg + dinv2 * hw + b_ref[...]

    h = jnp.maximum(conv(x_ref[...], w1_ref, b1_ref), 0.0)
    # TODO(synk): F.dropout is identity in eval mode; training-mode stochastic
    # dropout (pltpu.prng_seed / prng_random_bits) is not implemented.
    h = jnp.maximum(conv(h, w2_ref, b2_ref), 0.0)
    h = conv(h, w3_ref, b3_ref)
    # W3/b3 output dim is padded to 128 in the wrapper -> lane-dense store.
    o_ref[...] = jax.nn.sigmoid(h)


# ---------------------------------- wrapper ------------------------------------

@jax.jit
def forward(params, x, edge_index):
    n, d_in = x.shape
    e = edge_index.shape[1]
    d1 = params["W1"].shape[1]
    d2 = params["W2"].shape[1]
    d3 = params["W3"].shape[1]

    # Pad node rows and edge count to 128 (lane granularity).
    n_pad = _round_up(max(n, 128), 128)
    e_pad = _round_up(max(e, 128), 128)
    d3_pad = _round_up(max(d3, 128), 128)        # lane-dense output slab

    x_p = jnp.pad(x, ((0, n_pad - n), (0, 0)))

    src = jnp.pad(edge_index[0].astype(jnp.int32), (0, e_pad - e)).reshape(e_pad, 1)
    tgt = jnp.pad(edge_index[1].astype(jnp.int32), (0, e_pad - e)).reshape(1, e_pad)
    # per-edge weight: drop pre-existing self-loops (PyG add_remaining_self_loops)
    # and zero out padded edges.
    keep = (edge_index[0] != edge_index[1]).astype(jnp.float32)
    ew = jnp.pad(keep, (0, e_pad - e)).reshape(e_pad, 1)

    # Pad the final layer's output dim to 128 so the kernel's store is
    # lane-dense (unmasked vst); extra columns are zero and sliced off below.
    w3_p = jnp.pad(params["W3"], ((0, 0), (0, d3_pad - d3)))
    b3_p = jnp.pad(params["b3"], ((0, 0), (0, d3_pad - d3)))

    # Advisory cost hint for XLA's scheduler.
    flops = int(2 * n_pad * n_pad * e_pad                        # adj build
                + 2 * n_pad * (d_in * d1 + d1 * d2 + d2 * d3_pad)  # feature dots
                + 2 * n_pad * n_pad * (d1 + d2 + d3_pad)           # aggregations
                + 8 * n_pad * (d1 + d2 + d3_pad))                  # elementwise
    transcendentals = int(n_pad * d3_pad + 2 * n_pad)             # sigmoid + rsqrt
    in_bytes = (x_p.size + w3_p.size + b3_p.size + ew.size) * 4 \
        + (src.size + tgt.size) * 4 \
        + sum(params[k].size * 4 for k in ("W1", "b1", "W2", "b2"))
    bytes_accessed = int(in_bytes + n_pad * d3_pad * 4)

    out = pl.pallas_call(
        _gcn_kernel,
        out_shape=jax.ShapeDtypeStruct((n_pad, d3_pad), jnp.float32),
        in_specs=[pl.BlockSpec(memory_space=VMEM)] * 10,
        out_specs=pl.BlockSpec(memory_space=VMEM),
        compiler_params=pltpu.CompilerParams(vmem_limit_bytes=32 * 1024 * 1024),
        cost_estimate=pl.CostEstimate(flops=flops,
                                      transcendentals=transcendentals,
                                      bytes_accessed=bytes_accessed),
    )(src, tgt, ew, x_p,
      params["W1"], params["b1"], params["W2"], params["b2"],
      w3_p, b3_p)
    # TODO(synk): for large graphs (O(E*N) one-hots / O(N^2) adj no longer fit
    # VMEM -- half the size on v7x's 64 MiB), switch to the factored
    # T_hat @ (S_hat @ h) aggregation tiled over a ("parallel", "arbitrary")
    # grid instead of this single VMEM-resident block.
    return out[:n, :d3]


# ------------------------------ parameter creation ------------------------------

def init_params(key, n_feat):
    dims = [(n_feat, 2 * n_feat), (2 * n_feat, 4 * n_feat), (4 * n_feat, 1)]
    keys = jax.random.split(key, 2 * len(dims))
    params = {}
    for i, (din, dout) in enumerate(dims):
        bound = float(din) ** -0.5
        params[f"W{i+1}"] = jax.random.uniform(
            keys[2 * i], (din, dout), jnp.float32, -bound, bound)
        params[f"b{i+1}"] = jax.random.uniform(
            keys[2 * i + 1], (1, dout), jnp.float32, -bound, bound)
    return params


# ------------------------------ pure-JAX reference ------------------------------

def _ref_forward(params, x, edge_index):
    n = x.shape[0]
    src, tgt = edge_index[0], edge_index[1]
    keep = (src != tgt).astype(jnp.float32)            # drop existing self-loops
    loop = jnp.arange(n, dtype=src.dtype)
    src_f = jnp.concatenate([src, loop])
    tgt_f = jnp.concatenate([tgt, loop])
    w = jnp.concatenate([keep, jnp.ones((n,), jnp.float32)])
    deg = jnp.zeros((n,), jnp.float32).at[tgt_f].add(w)
    dis = jax.lax.rsqrt(deg)
    norm = w * dis[src_f] * dis[tgt_f]

    def conv(h, W, b):
        h = jnp.dot(h, W, precision=jax.lax.Precision.HIGHEST)
        out = jnp.zeros((n, h.shape[1]), jnp.float32).at[tgt_f].add(
            norm[:, None] * h[src_f])
        return out + b

    h = jax.nn.relu(conv(x, params["W1"], params["b1"]))
    h = jax.nn.relu(conv(h, params["W2"], params["b2"]))
    return jax.nn.sigmoid(conv(h, params["W3"], params["b3"]))


# ------------------------------------ main --------------------------------------

if __name__ == "__main__":
    N_FEAT = 8        # GCN(n_feat): n_feat -> 2*n_feat -> 4*n_feat -> 1
    N_NODES = 12
    N_EDGES = 32

    key = jax.random.PRNGKey(0)
    kp, kx, ks, kt = jax.random.split(key, 4)

    params = init_params(kp, N_FEAT)
    x = jax.random.normal(kx, (N_NODES, N_FEAT), jnp.float32)
    src = jax.random.randint(ks, (N_EDGES,), 0, N_NODES, jnp.int32)
    tgt = jax.random.randint(kt, (N_EDGES,), 0, N_NODES, jnp.int32)
    edge_index = jnp.stack([src, tgt])          # [2, E]

    out = forward(params, x, edge_index)
    out = jax.block_until_ready(out)
    assert out.shape == (N_NODES, 1)

    ref = _ref_forward(params, x, edge_index)
    max_diff = float(jnp.max(jnp.abs(out - ref)))
    # bf16-operand MXU dots vs a Precision.HIGHEST f32 reference: accept the
    # (explicitly loosened) tolerance per the perf review.
    assert jnp.allclose(out, ref, atol=1e-2), f"output mismatch, max |diff|={max_diff}"

    print("KERNEL_OK")
</pallas_src>

<mosaic_0001>
module attributes {stable_mosaic.version = 11 : i64} {
  func.func @_gcn_kernel(%arg0: memref<128x1xi32, #tpu.memory_space<vmem>>, %arg1: memref<1x128xi32, #tpu.memory_space<vmem>>, %arg2: memref<128x1xf32, #tpu.memory_space<vmem>>, %arg3: memref<128x8xf32, #tpu.memory_space<vmem>>, %arg4: memref<8x16xf32, #tpu.memory_space<vmem>>, %arg5: memref<1x16xf32, #tpu.memory_space<vmem>>, %arg6: memref<16x32xf32, #tpu.memory_space<vmem>>, %arg7: memref<1x32xf32, #tpu.memory_space<vmem>>, %arg8: memref<32x128xf32, #tpu.memory_space<vmem>>, %arg9: memref<1x128xf32, #tpu.memory_space<vmem>>, %arg10: memref<128x128xf32, #tpu.memory_space<vmem>>) attributes {dimension_semantics = [], scalar_prefetch = 0 : i64, scratch_operands = 0 : i64, tpu.core_type = #tpu.core_type<tc>} {
    %c0 = arith.constant 0 : index
    %c0_0 = arith.constant 0 : index
    %0 = vector.load %arg0[%c0, %c0_0] : memref<128x1xi32, #tpu.memory_space<vmem>>, vector<128x1xi32>
    %1 = tpu.iota {dimensions = array<i32: 1>} : vector<128x128xi32>
    %2 = vector.broadcast %0 : vector<128x1xi32> to vector<128x128xi32>
    %3 = arith.cmpi eq, %2, %1 : vector<128x128xi32>
    %4 = arith.extui %3 : vector<128x128xi1> to vector<128x128xi32>
    %5 = arith.sitofp %4 : vector<128x128xi32> to vector<128x128xf32>
    %6 = arith.truncf %5 : vector<128x128xf32> to vector<128x128xbf16>
    %c0_1 = arith.constant 0 : index
    %c0_2 = arith.constant 0 : index
    %7 = vector.load %arg2[%c0_1, %c0_2] : memref<128x1xf32, #tpu.memory_space<vmem>>, vector<128x1xf32>
    %8 = arith.truncf %7 : vector<128x1xf32> to vector<128x1xbf16>
    %9 = vector.broadcast %8 : vector<128x1xbf16> to vector<128x128xbf16>
    %10 = arith.mulf %6, %9 : vector<128x128xbf16>
    %c0_3 = arith.constant 0 : index
    %c0_4 = arith.constant 0 : index
    %11 = vector.load %arg1[%c0_3, %c0_4] : memref<1x128xi32, #tpu.memory_space<vmem>>, vector<1x128xi32>
    %12 = tpu.iota {dimensions = array<i32: 0>} : vector<128x128xi32>
    %13 = vector.broadcast %11 : vector<1x128xi32> to vector<128x128xi32>
    %14 = arith.cmpi eq, %13, %12 : vector<128x128xi32>
    %15 = arith.extui %14 : vector<128x128xi1> to vector<128x128xi32>
    %16 = arith.sitofp %15 : vector<128x128xi32> to vector<128x128xf32>
    %17 = arith.truncf %16 : vector<128x128xf32> to vector<128x128xbf16>
    %cst = arith.constant dense<0.000000e+00> : vector<128x128xf32>
    %18 = tpu.matmul %17, %10, %cst {dimension_numbers = #tpu.dot_dimension_numbers<[1], [0], [0], [1], [0, 0, 1, 1], [], []>} : vector<128x128xbf16>, vector<128x128xbf16>, vector<128x128xf32> -> vector<128x128xf32>
    %cst_5 = arith.constant dense<0.000000e+00> : vector<128xf32>
    %19 = vector.multi_reduction <add>, %18, %cst_5 [1] : vector<128x128xf32> to vector<128xf32>
    %20 = vector.shape_cast %19 : vector<128xf32> to vector<128x1xf32>
    %cst_6 = arith.constant 1.000000e+00 : f32
    %21 = vector.broadcast %cst_6 : f32 to vector<128x1xf32>
    %22 = arith.addf %20, %21 : vector<128x1xf32>
    %23 = math.rsqrt %22 : vector<128x1xf32>
    %24 = arith.mulf %23, %23 : vector<128x1xf32>
    %25 = arith.truncf %18 : vector<128x128xf32> to vector<128x128xbf16>
    %c0_7 = arith.constant 0 : index
    %c0_8 = arith.constant 0 : index
    %26 = vector.load %arg3[%c0_7, %c0_8] : memref<128x8xf32, #tpu.memory_space<vmem>>, vector<128x8xf32>
    %27 = arith.truncf %26 : vector<128x8xf32> to vector<128x8xbf16>
    %c0_9 = arith.constant 0 : index
    %c0_10 = arith.constant 0 : index
    %28 = vector.load %arg4[%c0_9, %c0_10] : memref<8x16xf32, #tpu.memory_space<vmem>>, vector<8x16xf32>
    %29 = arith.truncf %28 : vector<8x16xf32> to vector<8x16xbf16>
    %cst_11 = arith.constant dense<0.000000e+00> : vector<128x16xf32>
    %30 = tpu.matmul %27, %29, %cst_11 {dimension_numbers = #tpu.dot_dimension_numbers<[1], [0], [0], [1], [0, 0, 1, 1], [], []>} : vector<128x8xbf16>, vector<8x16xbf16>, vector<128x16xf32> -> vector<128x16xf32>
    %31 = vector.broadcast %23 : vector<128x1xf32> to vector<128x16xf32>
    %32 = arith.mulf %31, %30 : vector<128x16xf32>
    %33 = arith.truncf %32 : vector<128x16xf32> to vector<128x16xbf16>
    %cst_12 = arith.constant dense<0.000000e+00> : vector<128x16xf32>
    %34 = tpu.matmul %25, %33, %cst_12 {dimension_numbers = #tpu.dot_dimension_numbers<[1], [0], [0], [1], [0, 0, 1, 1], [], []>} : vector<128x128xbf16>, vector<128x16xbf16>, vector<128x16xf32> -> vector<128x16xf32>
    %35 = vector.broadcast %23 : vector<128x1xf32> to vector<128x16xf32>
    %36 = arith.mulf %35, %34 : vector<128x16xf32>
    %37 = vector.broadcast %24 : vector<128x1xf32> to vector<128x16xf32>
    %38 = arith.mulf %37, %30 : vector<128x16xf32>
    %39 = arith.addf %36, %38 : vector<128x16xf32>
    %c0_13 = arith.constant 0 : index
    %c0_14 = arith.constant 0 : index
    %40 = vector.load %arg5[%c0_13, %c0_14] : memref<1x16xf32, #tpu.memory_space<vmem>>, vector<1x16xf32>
    %41 = vector.broadcast %40 : vector<1x16xf32> to vector<128x16xf32>
    %42 = arith.addf %39, %41 : vector<128x16xf32>
    %cst_15 = arith.constant 0.000000e+00 : f32
    %43 = vector.broadcast %cst_15 : f32 to vector<128x16xf32>
    %44 = arith.maximumf %42, %43 : vector<128x16xf32>
    %45 = arith.truncf %44 : vector<128x16xf32> to vector<128x16xbf16>
    %c0_16 = arith.constant 0 : index
    %c0_17 = arith.constant 0 : index
    %46 = vector.load %arg6[%c0_16, %c0_17] : memref<16x32xf32, #tpu.memory_space<vmem>>, vector<16x32xf32>
    %47 = arith.truncf %46 : vector<16x32xf32> to vector<16x32xbf16>
    %cst_18 = arith.constant dense<0.000000e+00> : vector<128x32xf32>
    %48 = tpu.matmul %45, %47, %cst_18 {dimension_numbers = #tpu.dot_dimension_numbers<[1], [0], [0], [1], [0, 0, 1, 1], [], []>} : vector<128x16xbf16>, vector<16x32xbf16>, vector<128x32xf32> -> vector<128x32xf32>
    %49 = vector.broadcast %23 : vector<128x1xf32> to vector<128x32xf32>
    %50 = arith.mulf %49, %48 : vector<128x32xf32>
    %51 = arith.truncf %50 : vector<128x32xf32> to vector<128x32xbf16>
    %cst_19 = arith.constant dense<0.000000e+00> : vector<128x32xf32>
    %52 = tpu.matmul %25, %51, %cst_19 {dimension_numbers = #tpu.dot_dimension_numbers<[1], [0], [0], [1], [0, 0, 1, 1], [], []>} : vector<128x128xbf16>, vector<128x32xbf16>, vector<128x32xf32> -> vector<128x32xf32>
    %53 = vector.broadcast %23 : vector<128x1xf32> to vector<128x32xf32>
    %54 = arith.mulf %53, %52 : vector<128x32xf32>
    %55 = vector.broadcast %24 : vector<128x1xf32> to vector<128x32xf32>
    %56 = arith.mulf %55, %48 : vector<128x32xf32>
    %57 = arith.addf %54, %56 : vector<128x32xf32>
    %c0_20 = arith.constant 0 : index
    %c0_21 = arith.constant 0 : index
    %58 = vector.load %arg7[%c0_20, %c0_21] : memref<1x32xf32, #tpu.memory_space<vmem>>, vector<1x32xf32>
    %59 = vector.broadcast %58 : vector<1x32xf32> to vector<128x32xf32>
    %60 = arith.addf %57, %59 : vector<128x32xf32>
    %cst_22 = arith.constant 0.000000e+00 : f32
    %61 = vector.broadcast %cst_22 : f32 to vector<128x32xf32>
    %62 = arith.maximumf %60, %61 : vector<128x32xf32>
    %63 = arith.truncf %62 : vector<128x32xf32> to vector<128x32xbf16>
    %c0_23 = arith.constant 0 : index
    %c0_24 = arith.constant 0 : index
    %64 = vector.load %arg8[%c0_23, %c0_24] : memref<32x128xf32, #tpu.memory_space<vmem>>, vector<32x128xf32>
    %65 = arith.truncf %64 : vector<32x128xf32> to vector<32x128xbf16>
    %cst_25 = arith.constant dense<0.000000e+00> : vector<128x128xf32>
    %66 = tpu.matmul %63, %65, %cst_25 {dimension_numbers = #tpu.dot_dimension_numbers<[1], [0], [0], [1], [0, 0, 1, 1], [], []>} : vector<128x32xbf16>, vector<32x128xbf16>, vector<128x128xf32> -> vector<128x128xf32>
    %67 = vector.broadcast %23 : vector<128x1xf32> to vector<128x128xf32>
    %68 = arith.mulf %67, %66 : vector<128x128xf32>
    %69 = arith.truncf %68 : vector<128x128xf32> to vector<128x128xbf16>
    %cst_26 = arith.constant dense<0.000000e+00> : vector<128x128xf32>
    %70 = tpu.matmul %25, %69, %cst_26 {dimension_numbers = #tpu.dot_dimension_numbers<[1], [0], [0], [1], [0, 0, 1, 1], [], []>} : vector<128x128xbf16>, vector<128x128xbf16>, vector<128x128xf32> -> vector<128x128xf32>
    %71 = vector.broadcast %23 : vector<128x1xf32> to vector<128x128xf32>
    %72 = arith.mulf %71, %70 : vector<128x128xf32>
    %73 = vector.broadcast %24 : vector<128x1xf32> to vector<128x128xf32>
    %74 = arith.mulf %73, %66 : vector<128x128xf32>
    %75 = arith.addf %72, %74 : vector<128x128xf32>
    %c0_27 = arith.constant 0 : index
    %c0_28 = arith.constant 0 : index
    %76 = vector.load %arg9[%c0_27, %c0_28] : memref<1x128xf32, #tpu.memory_space<vmem>>, vector<1x128xf32>
    %77 = vector.broadcast %76 : vector<1x128xf32> to vector<128x128xf32>
    %78 = arith.addf %75, %77 : vector<128x128xf32>
    %79 = arith.negf %78 : vector<128x128xf32>
    %80 = math.exp %79 : vector<128x128xf32>
    %cst_29 = arith.constant 1.000000e+00 : f32
    %81 = vector.broadcast %cst_29 : f32 to vector<128x128xf32>
    %82 = arith.addf %81, %80 : vector<128x128xf32>
    %83 = arith.divf %81, %82 : vector<128x128xf32>
    %c0_30 = arith.constant 0 : index
    %c0_31 = arith.constant 0 : index
    %84 = vector.load %arg10[%c0_30, %c0_31] : memref<128x128xf32, #tpu.memory_space<vmem>>, vector<128x128xf32>
    tpu.vector_store %arg10[%c0_30, %c0_31], %83 {strides = array<i32>} : memref<128x128xf32, #tpu.memory_space<vmem>>, vector<128x128xf32>,
    return
  }
}

</mosaic_0001>

<llo_original>
// kernel: forward.1
$region0: #{forward.1}
  #allocation0 [shape = 'u32[]', space=smem, size = 0x4, offset = 0x4, fixed_abs, tag = 'smem constant byte address 0x4 - core index']
  #allocation1 [shape = 'u32[72,128]{1,0:T(1,128)}', space=vmem, size = 0x9000, scoped, tag = 'internal scratch']
  %s0 = inlined_call_operand.vmem [shape: s32[128,1], index: 0, kind: input, shape index: {}]
  %s1 = inlined_call_operand.vmem [shape: s32[1,128], index: 1, kind: input, shape index: {}]
  %s2 = inlined_call_operand.vmem [shape: f32[128,1], index: 2, kind: input, shape index: {}]
  %s3 = inlined_call_operand.vmem [shape: f32[128,8], index: 3, kind: input, shape index: {}]
  %s4 = inlined_call_operand.vmem [shape: f32[8,16], index: 4, kind: input, shape index: {}]
  %s5 = inlined_call_operand.vmem [shape: f32[1,16], index: 5, kind: input, shape index: {}]
  %s6 = inlined_call_operand.vmem [shape: f32[16,32], index: 6, kind: input, shape index: {}]
  %s7 = inlined_call_operand.vmem [shape: f32[1,32], index: 7, kind: input, shape index: {}]
  %s8 = inlined_call_operand.vmem [shape: f32[32,128], index: 8, kind: input, shape index: {}]
  %s9 = inlined_call_operand.vmem [shape: f32[1,128], index: 9, kind: input, shape index: {}]
  %s10 = inlined_call_operand.vmem [shape: f32[128,128], index: 10, kind: output, shape index: {}]
  %s11 = sld [smem:[#allocation0]]
  $region50: #{forward.1} parent=0
    _
  %s13 = ssub.s32 1, %s11
  %s14 = scalar_select 0, %s13, %s11
  // Predicated region
  $region2: #{forward.1} parent=0 // pred_check
    _
  $region3: #{forward.1} parent=0 // pred_check_branch
    %16 = sbr.rel (0) target = $region5
  $region4: #{forward.1} parent=0 // pred_region
    _
  $region5: #{forward.1} parent=0 // pred_fallthru
    _
  // Predicated region
  $region6: #{forward.1} parent=0 // pred_check
    _
  $region7: #{forward.1} parent=0 // pred_check_branch
    %18 = sbr.rel (0) target = $region9
  $region8: #{forward.1} parent=0 // pred_region
    _
  $region9: #{forward.1} parent=0 // pred_fallthru
    _
  // Predicated region
  $region10: #{forward.1} parent=0 // pred_check
    _
  $region11: #{forward.1} parent=0 // pred_check_branch
    %20 = sbr.rel (0) target = $region13
  $region12: #{forward.1} parent=0 // pred_region
    _
  $region13: #{forward.1} parent=0 // pred_fallthru
    _
  // Predicated region
  $region14: #{forward.1} parent=0 // pred_check
    _
  $region15: #{forward.1} parent=0 // pred_check_branch
    %22 = sbr.rel (0) target = $region17
  $region16: #{forward.1} parent=0 // pred_region
    _
  $region17: #{forward.1} parent=0 // pred_fallthru
    _
  // Predicated region
  $region18: #{forward.1} parent=0 // pred_check
    _
  $region19: #{forward.1} parent=0 // pred_check_branch
    %24 = sbr.rel (0) target = $region21
  $region20: #{forward.1} parent=0 // pred_region
    _
  $region21: #{forward.1} parent=0 // pred_fallthru
    _
  // Predicated region
  $region22: #{forward.1} parent=0 // pred_check
    _
  $region23: #{forward.1} parent=0 // pred_check_branch
    %26 = sbr.rel (0) target = $region25
  $region24: #{forward.1} parent=0 // pred_region
    _
  $region25: #{forward.1} parent=0 // pred_fallthru
    _
  // Predicated region
  $region26: #{forward.1} parent=0 // pred_check
    _
  $region27: #{forward.1} parent=0 // pred_check_branch
    %28 = sbr.rel (0) target = $region29
  $region28: #{forward.1} parent=0 // pred_region
    _
  $region29: #{forward.1} parent=0 // pred_fallthru
    _
  // Predicated region
  $region30: #{forward.1} parent=0 // pred_check
    _
  $region31: #{forward.1} parent=0 // pred_check_branch
    %30 = sbr.rel (0) target = $region33
  $region32: #{forward.1} parent=0 // pred_region
    _
  $region33: #{forward.1} parent=0 // pred_fallthru
    _
  // Predicated region
  $region34: #{forward.1} parent=0 // pred_check
    _
  $region35: #{forward.1} parent=0 // pred_check_branch
    %32 = sbr.rel (0) target = $region37
  $region36: #{forward.1} parent=0 // pred_region
    _
  $region37: #{forward.1} parent=0 // pred_fallthru
    _
  // Predicated region
  $region38: #{forward.1} parent=0 // pred_check
    _
  $region39: #{forward.1} parent=0 // pred_check_branch
    %34 = sbr.rel (0) target = $region41
  $region40: #{forward.1} parent=0 // pred_region
    _
  $region41: #{forward.1} parent=0 // pred_fallthru
    _
  %v36 = vld [vmem:[%s0] sm:$0xff]
  %v37 = vld [vmem:[%s0 + $0x8] sm:$0xff]
  %v38 = vld [vmem:[%s0 + $0x10] sm:$0xff]
  %v39 = vld [vmem:[%s0 + $0x18] sm:$0xff]
  %v40 = vld [vmem:[%s0 + $0x20] sm:$0xff]
  %v41 = vld [vmem:[%s0 + $0x28] sm:$0xff]
  %v42 = vld [vmem:[%s0 + $0x30] sm:$0xff]
  %v43 = vld [vmem:[%s0 + $0x38] sm:$0xff]
  %v44 = vld [vmem:[%s0 + $0x40] sm:$0xff]
  %v45 = vld [vmem:[%s0 + $0x48] sm:$0xff]
  %v46 = vld [vmem:[%s0 + $0x50] sm:$0xff]
  %v47 = vld [vmem:[%s0 + $0x58] sm:$0xff]
  %v48 = vld [vmem:[%s0 + $0x60] sm:$0xff]
  %v49 = vld [vmem:[%s0 + $0x68] sm:$0xff]
  %v50 = vld [vmem:[%s0 + $0x70] sm:$0xff]
  %v51 = vld [vmem:[%s0 + $0x78] sm:$0xff]
  %v52 = vlaneseq
  %v53 = vand.u32 %v52, 127
  %54 = vset.pattern.permute.xlu0 0
  %55 = vperm.xlu0 %54, %v36
  %v56 = vpop.permute.xlu0 %55
  %57 = vset.pattern.permute.xlu0 0
  %58 = vperm.xlu0 %57, %v37
  %v59 = vpop.permute.xlu0 %58
  %60 = vset.pattern.permute.xlu0 0
  %61 = vperm.xlu0 %60, %v38
  %v62 = vpop.permute.xlu0 %61
  %63 = vset.pattern.permute.xlu0 0
  %64 = vperm.xlu0 %63, %v39
  %v65 = vpop.permute.xlu0 %64
  %66 = vset.pattern.permute.xlu0 0
  %67 = vperm.xlu0 %66, %v40
  %v68 = vpop.permute.xlu0 %67
  %69 = vset.pattern.permute.xlu0 0
  %70 = vperm.xlu0 %69, %v41
  %v71 = vpop.permute.xlu0 %70
  %72 = vset.pattern.permute.xlu0 0
  %73 = vperm.xlu0 %72, %v42
  %v74 = vpop.permute.xlu0 %73
  %75 = vset.pattern.permute.xlu0 0
  %76 = vperm.xlu0 %75, %v43
  %v77 = vpop.permute.xlu0 %76
  %78 = vset.pattern.permute.xlu0 0
  %79 = vperm.xlu0 %78, %v44
  %v80 = vpop.permute.xlu0 %79
  %81 = vset.pattern.permute.xlu0 0
  %82 = vperm.xlu0 %81, %v45
  %v83 = vpop.permute.xlu0 %82
  %84 = vset.pattern.permute.xlu0 0
  %85 = vperm.xlu0 %84, %v46
  %v86 = vpop.permute.xlu0 %85
  %87 = vset.pattern.permute.xlu0 0
  %88 = vperm.xlu0 %87, %v47
  %v89 = vpop.permute.xlu0 %88
  %90 = vset.pattern.permute.xlu0 0
  %91 = vperm.xlu0 %90, %v48
  %v92 = vpop.permute.xlu0 %91
  %93 = vset.pattern.permute.xlu0 0
  %94 = vperm.xlu0 %93, %v49
  %v95 = vpop.permute.xlu0 %94
  %96 = vset.pattern.permute.xlu0 0
  %97 = vperm.xlu0 %96, %v50
  %v98 = vpop.permute.xlu0 %97
  %99 = vset.pattern.permute.xlu0 0
  %100 = vperm.xlu0 %99, %v51
  %v101 = vpop.permute.xlu0 %100
  %vm102 = vcmp.eq.s32.totalorder %v56, %v53
  %vm103 = vcmp.eq.s32.totalorder %v59, %v53
  %vm104 = vcmp.eq.s32.totalorder %v62, %v53
  %vm105 = vcmp.eq.s32.totalorder %v65, %v53
  %vm106 = vcmp.eq.s32.totalorder %v68, %v53
  %vm107 = vcmp.eq.s32.totalorder %v71, %v53
  %vm108 = vcmp.eq.s32.totalorder %v74, %v53
  %vm109 = vcmp.eq.s32.totalorder %v77, %v53
  %vm110 = vcmp.eq.s32.totalorder %v80, %v53
  %vm111 = vcmp.eq.s32.totalorder %v83, %v53
  %vm112 = vcmp.eq.s32.totalorder %v86, %v53
  %vm113 = vcmp.eq.s32.totalorder %v89, %v53
  %vm114 = vcmp.eq.s32.totalorder %v92, %v53
  %vm115 = vcmp.eq.s32.totalorder %v95, %v53
  %vm116 = vcmp.eq.s32.totalorder %v98, %v53
  %vm117 = vcmp.eq.s32.totalorder %v101, %v53
  %v118 = vsel %vm102, 1, 0
  %v119 = vsel %vm103, 1, 0
  %v120 = vsel %vm104, 1, 0
  %v121 = vsel %vm105, 1, 0
  %v122 = vsel %vm106, 1, 0
  %v123 = vsel %vm107, 1, 0
  %v124 = vsel %vm108, 1, 0
  %v125 = vsel %vm109, 1, 0
  %v126 = vsel %vm110, 1, 0
  %v127 = vsel %vm111, 1, 0
  %v128 = vsel %vm112, 1, 0
  %v129 = vsel %vm113, 1, 0
  %v130 = vsel %vm114, 1, 0
  %v131 = vsel %vm115, 1, 0
  %v132 = vsel %vm116, 1, 0
  %v133 = vsel %vm117, 1, 0
  %v134 = vcvt.s32.f32 %v118
  %v135 = vcvt.s32.f32 %v119
  %v136 = vcvt.s32.f32 %v120
  %v137 = vcvt.s32.f32 %v121
  %v138 = vcvt.s32.f32 %v122
  %v139 = vcvt.s32.f32 %v123
  %v140 = vcvt.s32.f32 %v124
  %v141 = vcvt.s32.f32 %v125
  %v142 = vcvt.s32.f32 %v126
  %v143 = vcvt.s32.f32 %v127
  %v144 = vcvt.s32.f32 %v128
  %v145 = vcvt.s32.f32 %v129
  %v146 = vcvt.s32.f32 %v130
  %v147 = vcvt.s32.f32 %v131
  %v148 = vcvt.s32.f32 %v132
  %v149 = vcvt.s32.f32 %v133
  %v150 = vpack.c.bf16 %v134, %v134
  %v151 = vpack.c.bf16 %v135, %v135
  %v152 = vpack.c.bf16 %v136, %v136
  %v153 = vpack.c.bf16 %v137, %v137
  %v154 = vpack.c.bf16 %v138, %v138
  %v155 = vpack.c.bf16 %v139, %v139
  %v156 = vpack.c.bf16 %v140, %v140
  %v157 = vpack.c.bf16 %v141, %v141
  %v158 = vpack.c.bf16 %v142, %v142
  %v159 = vpack.c.bf16 %v143, %v143
  %v160 = vpack.c.bf16 %v144, %v144
  %v161 = vpack.c.bf16 %v145, %v145
  %v162 = vpack.c.bf16 %v146, %v146
  %v163 = vpack.c.bf16 %v147, %v147
  %v164 = vpack.c.bf16 %v148, %v148
  %v165 = vpack.c.bf16 %v149, %v149
  %v166 = vld [vmem:[%s2] sm:$0xff]
  %v167 = vld [vmem:[%s2 + $0x8] sm:$0xff]
  %v168 = vld [vmem:[%s2 + $0x10] sm:$0xff]
  %v169 = vld [vmem:[%s2 + $0x18] sm:$0xff]
  %v170 = vld [vmem:[%s2 + $0x20] sm:$0xff]
  %v171 = vld [vmem:[%s2 + $0x28] sm:$0xff]
  %v172 = vld [vmem:[%s2 + $0x30] sm:$0xff]
  %v173 = vld [vmem:[%s2 + $0x38] sm:$0xff]
  %v174 = vld [vmem:[%s2 + $0x40] sm:$0xff]
  %v175 = vld [vmem:[%s2 + $0x48] sm:$0xff]
  %v176 = vld [vmem:[%s2 + $0x50] sm:$0xff]
  %v177 = vld [vmem:[%s2 + $0x58] sm:$0xff]
  %v178 = vld [vmem:[%s2 + $0x60] sm:$0xff]
  %v179 = vld [vmem:[%s2 + $0x68] sm:$0xff]
  %v180 = vld [vmem:[%s2 + $0x70] sm:$0xff]
  %v181 = vld [vmem:[%s2 + $0x78] sm:$0xff]
  %v182 = vpack.c.bf16 %v166, %v166
  %v183 = vpack.c.bf16 %v167, %v167
  %v184 = vpack.c.bf16 %v168, %v168
  %v185 = vpack.c.bf16 %v169, %v169
  %v186 = vpack.c.bf16 %v170, %v170
  %v187 = vpack.c.bf16 %v171, %v171
  %v188 = vpack.c.bf16 %v172, %v172
  %v189 = vpack.c.bf16 %v173, %v173
  %v190 = vpack.c.bf16 %v174, %v174
  %v191 = vpack.c.bf16 %v175, %v175
  %v192 = vpack.c.bf16 %v176, %v176
  %v193 = vpack.c.bf16 %v177, %v177
  %v194 = vpack.c.bf16 %v178, %v178
  %v195 = vpack.c.bf16 %v179, %v179
  %v196 = vpack.c.bf16 %v180, %v180
  %v197 = vpack.c.bf16 %v181, %v181
  %199 = vset.pattern.permute.xlu0 0
  %200 = vperm.xlu0 %199, %v182
  %v201 = vpop.permute.xlu0 %200
  %v204 = vunpack.c.l.s4 839922192
  %v205 = vunpack.c.0.s8 %v204
  %v206 = vperm.slane %v201, %v205
  %208 = vset.pattern.permute.xlu0 0
  %209 = vperm.xlu0 %208, %v183
  %v210 = vpop.permute.xlu0 %209
  %v213 = vunpack.c.l.s4 839922192
  %v214 = vunpack.c.0.s8 %v213
  %v215 = vperm.slane %v210, %v214
  %217 = vset.pattern.permute.xlu0 0
  %218 = vperm.xlu0 %217, %v184
  %v219 = vpop.permute.xlu0 %218
  %v222 = vunpack.c.l.s4 839922192
  %v223 = vunpack.c.0.s8 %v222
  %v224 = vperm.slane %v219, %v223
  %226 = vset.pattern.permute.xlu0 0
  %227 = vperm.xlu0 %226, %v185
  %v228 = vpop.permute.xlu0 %227
  %v231 = vunpack.c.l.s4 839922192
  %v232 = vunpack.c.0.s8 %v231
  %v233 = vperm.slane %v228, %v232
  %235 = vset.pattern.permute.xlu0 0
  %236 = vperm.xlu0 %235, %v186
  %v237 = vpop.permute.xlu0 %236
  %v240 = vunpack.c.l.s4 839922192
  %v241 = vunpack.c.0.s8 %v240
  %v242 = vperm.slane %v237, %v241
  %244 = vset.pattern.permute.xlu0 0
  %245 = vperm.xlu0 %244, %v187
  %v246 = vpop.permute.xlu0 %245
  %v249 = vunpack.c.l.s4 839922192
  %v250 = vunpack.c.0.s8 %v249
  %v251 = vperm.slane %v246, %v250
  %253 = vset.pattern.permute.xlu0 0
  %254 = vperm.xlu0 %253, %v188
  %v255 = vpop.permute.xlu0 %254
  %v258 = vunpack.c.l.s4 839922192
  %v259 = vunpack.c.0.s8 %v258
  %v260 = vperm.slane %v255, %v259
  %262 = vset.pattern.permute.xlu0 0
  %263 = vperm.xlu0 %262, %v189
  %v264 = vpop.permute.xlu0 %263
  %v267 = vunpack.c.l.s4 839922192
  %v268 = vunpack.c.0.s8 %v267
  %v269 = vperm.slane %v264, %v268
  %271 = vset.pattern.permute.xlu0 0
  %272 = vperm.xlu0 %271, %v190
  %v273 = vpop.permute.xlu0 %272
  %v276 = vunpack.c.l.s4 839922192
  %v277 = vunpack.c.0.s8 %v276
  %v278 = vperm.slane %v273, %v277
  %280 = vset.pattern.permute.xlu0 0
  %281 = vperm.xlu0 %280, %v191
  %v282 = vpop.permute.xlu0 %281
  %v285 = vunpack.c.l.s4 839922192
  %v286 = vunpack.c.0.s8 %v285
  %v287 = vperm.slane %v282, %v286
  %289 = vset.pattern.permute.xlu0 0
  %290 = vperm.xlu0 %289, %v192
  %v291 = vpop.permute.xlu0 %290
  %v294 = vunpack.c.l.s4 839922192
  %v295 = vunpack.c.0.s8 %v294
  %v296 = vperm.slane %v291, %v295
  %298 = vset.pattern.permute.xlu0 0
  %299 = vperm.xlu0 %298, %v193
  %v300 = vpop.permute.xlu0 %299
  %v303 = vunpack.c.l.s4 839922192
  %v304 = vunpack.c.0.s8 %v303
  %v305 = vperm.slane %v300, %v304
  %307 = vset.pattern.permute.xlu0 0
  %308 = vperm.xlu0 %307, %v194
  %v309 = vpop.permute.xlu0 %308
  %v312 = vunpack.c.l.s4 839922192
  %v313 = vunpack.c.0.s8 %v312
  %v314 = vperm.slane %v309, %v313
  %316 = vset.pattern.permute.xlu0 0
  %317 = vperm.xlu0 %316, %v195
  %v318 = vpop.permute.xlu0 %317
  %v321 = vunpack.c.l.s4 839922192
  %v322 = vunpack.c.0.s8 %v321
  %v323 = vperm.slane %v318, %v322
  %325 = vset.pattern.permute.xlu0 0
  %326 = vperm.xlu0 %325, %v196
  %v327 = vpop.permute.xlu0 %326
  %v330 = vunpack.c.l.s4 839922192
  %v331 = vunpack.c.0.s8 %v330
  %v332 = vperm.slane %v327, %v331
  %334 = vset.pattern.permute.xlu0 0
  %335 = vperm.xlu0 %334, %v197
  %v336 = vpop.permute.xlu0 %335
  %v339 = vunpack.c.l.s4 839922192
  %v340 = vunpack.c.0.s8 %v339
  %v341 = vperm.slane %v336, %v340
  %v342 = vunpack.c.l.bf16 %v150
  %v343 = vunpack.c.l.bf16 %v151
  %v344 = vunpack.c.l.bf16 %v152
  %v345 = vunpack.c.l.bf16 %v153
  %v346 = vunpack.c.l.bf16 %v154
  %v347 = vunpack.c.l.bf16 %v155
  %v348 = vunpack.c.l.bf16 %v156
  %v349 = vunpack.c.l.bf16 %v157
  %v350 = vunpack.c.l.bf16 %v158
  %v351 = vunpack.c.l.bf16 %v159
  %v352 = vunpack.c.l.bf16 %v160
  %v353 = vunpack.c.l.bf16 %v161
  %v354 = vunpack.c.l.bf16 %v162
  %v355 = vunpack.c.l.bf16 %v163
  %v356 = vunpack.c.l.bf16 %v164
  %v357 = vunpack.c.l.bf16 %v165
  %v358 = vunpack.c.l.bf16 %v206
  %v359 = vunpack.c.l.bf16 %v215
  %v360 = vunpack.c.l.bf16 %v224
  %v361 = vunpack.c.l.bf16 %v233
  %v362 = vunpack.c.l.bf16 %v242
  %v363 = vunpack.c.l.bf16 %v251
  %v364 = vunpack.c.l.bf16 %v260
  %v365 = vunpack.c.l.bf16 %v269
  %v366 = vunpack.c.l.bf16 %v278
  %v367 = vunpack.c.l.bf16 %v287
  %v368 = vunpack.c.l.bf16 %v296
  %v369 = vunpack.c.l.bf16 %v305
  %v370 = vunpack.c.l.bf16 %v314
  %v371 = vunpack.c.l.bf16 %v323
  %v372 = vunpack.c.l.bf16 %v332
  %v373 = vunpack.c.l.bf16 %v341
  %v374 = vmul.f32 %v342, %v358
  %v375 = vmul.f32 %v343, %v359
  %v376 = vmul.f32 %v344, %v360
  %v377 = vmul.f32 %v345, %v361
  %v378 = vmul.f32 %v346, %v362
  %v379 = vmul.f32 %v347, %v363
  %v380 = vmul.f32 %v348, %v364
  %v381 = vmul.f32 %v349, %v365
  %v382 = vmul.f32 %v350, %v366
  %v383 = vmul.f32 %v351, %v367
  %v384 = vmul.f32 %v352, %v368
  %v385 = vmul.f32 %v353, %v369
  %v386 = vmul.f32 %v354, %v370
  %v387 = vmul.f32 %v355, %v371
  %v388 = vmul.f32 %v356, %v372
  %v389 = vmul.f32 %v357, %v373
  %v390 = vpack.c.bf16 %v375, %v374
  %v391 = vpack.c.bf16 %v377, %v376
  %v392 = vpack.c.bf16 %v379, %v378
  %v393 = vpack.c.bf16 %v381, %v380
  %v394 = vpack.c.bf16 %v383, %v382
  %v395 = vpack.c.bf16 %v385, %v384
  %v396 = vpack.c.bf16 %v387, %v386
  %v397 = vpack.c.bf16 %v389, %v388
  %v398 = vld [vmem:[%s1] sm:$0x1]
  %v399 = vlaneseq
  %v400 = vshrl.u32 %v399, 7
  %v401 = vadd.s32 %v400, 8
  %v402 = vadd.s32 %v400, 16
  %v403 = vadd.s32 %v400, 24
  %v404 = vadd.s32 %v400, 32
  %v405 = vadd.s32 %v400, 40
  %v406 = vadd.s32 %v400, 48
  %v407 = vadd.s32 %v400, 56
  %v408 = vadd.s32 %v400, 64
  %v409 = vadd.s32 %v400, 72
  %v410 = vadd.s32 %v400, 80
  %v411 = vadd.s32 %v400, 88
  %v412 = vadd.s32 %v400, 96
  %v413 = vadd.s32 %v400, 104
  %v414 = vadd.s32 %v400, 112
  %v415 = vadd.s32 %v400, 120
  %v416 = vperm.slane %v398, 0
  %vm417 = vcmp.eq.s32.totalorder %v416, %v400
  %vm418 = vcmp.eq.s32.totalorder %v416, %v401
  %vm419 = vcmp.eq.s32.totalorder %v416, %v402
  %vm420 = vcmp.eq.s32.totalorder %v416, %v403
  %vm421 = vcmp.eq.s32.totalorder %v416, %v404
  %vm422 = vcmp.eq.s32.totalorder %v416, %v405
  %vm423 = vcmp.eq.s32.totalorder %v416, %v406
  %vm424 = vcmp.eq.s32.totalorder %v416, %v407
  %vm425 = vcmp.eq.s32.totalorder %v416, %v408
  %vm426 = vcmp.eq.s32.totalorder %v416, %v409
  %vm427 = vcmp.eq.s32.totalorder %v416, %v410
  %vm428 = vcmp.eq.s32.totalorder %v416, %v411
  %vm429 = vcmp.eq.s32.totalorder %v416, %v412
  %vm430 = vcmp.eq.s32.totalorder %v416, %v413
  %vm431 = vcmp.eq.s32.totalorder %v416, %v414
  %vm432 = vcmp.eq.s32.totalorder %v416, %v415
  %v433 = vsel %vm417, 1, 0
  %v434 = vsel %vm418, 1, 0
  %v435 = vsel %vm419, 1, 0
  %v436 = vsel %vm420, 1, 0
  %v437 = vsel %vm421, 1, 0
  %v438 = vsel %vm422, 1, 0
  %v439 = vsel %vm423, 1, 0
  %v440 = vsel %vm424, 1, 0
  %v441 = vsel %vm425, 1, 0
  %v442 = vsel %vm426, 1, 0
  %v443 = vsel %vm427, 1, 0
  %v444 = vsel %vm428, 1, 0
  %v445 = vsel %vm429, 1, 0
  %v446 = vsel %vm430, 1, 0
  %v447 = vsel %vm431, 1, 0
  %v448 = vsel %vm432, 1, 0
  %v449 = vcvt.s32.f32 %v433
  %v450 = vcvt.s32.f32 %v434
  %v451 = vcvt.s32.f32 %v435
  %v452 = vcvt.s32.f32 %v436
  %v453 = vcvt.s32.f32 %v437
  %v454 = vcvt.s32.f32 %v438
  %v455 = vcvt.s32.f32 %v439
  %v456 = vcvt.s32.f32 %v440
  %v457 = vcvt.s32.f32 %v441
  %v458 = vcvt.s32.f32 %v442
  %v459 = vcvt.s32.f32 %v443
  %v460 = vcvt.s32.f32 %v444
  %v461 = vcvt.s32.f32 %v445
  %v462 = vcvt.s32.f32 %v446
  %v463 = vcvt.s32.f32 %v447
  %v464 = vcvt.s32.f32 %v448
  %v465 = vpack.c.bf16 %v450, %v449
  %v466 = vpack.c.bf16 %v452, %v451
  %v467 = vpack.c.bf16 %v454, %v453
  %v468 = vpack.c.bf16 %v456, %v455
  %v469 = vpack.c.bf16 %v458, %v457
  %v470 = vpack.c.bf16 %v460, %v459
  %v471 = vpack.c.bf16 %v462, %v461
  %v472 = vpack.c.bf16 %v464, %v463
  %473 = vmatpush.bf16.msra.mxu0 %v397
  %474 = vmatpush.bf16.msra.mxu0 %v396
  %475 = vmatpush.bf16.msra.mxu0 %v395
  %476 = vmatpush.bf16.msra.mxu0 %v394
  %477 = vmatpush.bf16.msra.mxu0 %v393
  %478 = vmatpush.bf16.msra.mxu0 %v392
  %479 = vmatpush.bf16.msra.mxu0 %v391
  %480 = vmatpush.bf16.msra.mxu0 %v390
  %481 = vmatmul.bf16.gmra.mxu0 %v465
  %v482 = vpop.f32.mrf.mxu0
  %v483 = vadd.f32 0.0, %v482
  %v484 = vpop.f32.mrf.mxu0
  %v485 = vadd.f32 0.0, %v484
  %486 = vmatmul.bf16.gmra.mxu0 %v466
  %v487 = vpop.f32.mrf.mxu0
  %v488 = vadd.f32 0.0, %v487
  %v489 = vpop.f32.mrf.mxu0
  %v490 = vadd.f32 0.0, %v489
  %491 = vmatmul.bf16.gmra.mxu0 %v467
  %v492 = vpop.f32.mrf.mxu0
  %v493 = vadd.f32 0.0, %v492
  %v494 = vpop.f32.mrf.mxu0
  %v495 = vadd.f32 0.0, %v494
  %496 = vmatmul.bf16.gmra.mxu0 %v468
  %v497 = vpop.f32.mrf.mxu0
  %v498 = vadd.f32 0.0, %v497
  %v499 = vpop.f32.mrf.mxu0
  %v500 = vadd.f32 0.0, %v499
  %501 = vmatmul.bf16.gmra.mxu0 %v469
  %v502 = vpop.f32.mrf.mxu0
  %v503 = vadd.f32 0.0, %v502
  %v504 = vpop.f32.mrf.mxu0
  %v505 = vadd.f32 0.0, %v504
  %506 = vmatmul.bf16.gmra.mxu0 %v470
  %v507 = vpop.f32.mrf.mxu0
  %v508 = vadd.f32 0.0, %v507
  %v509 = vpop.f32.mrf.mxu0
  %v510 = vadd.f32 0.0, %v509
  %511 = vmatmul.bf16.gmra.mxu0 %v471
  %v512 = vpop.f32.mrf.mxu0
  %v513 = vadd.f32 0.0, %v512
  %v514 = vpop.f32.mrf.mxu0
  %v515 = vadd.f32 0.0, %v514
  %516 = vmatmul.bf16.gmra.mxu0 %v472
  %v517 = vpop.f32.mrf.mxu0
  %v518 = vadd.f32 0.0, %v517
  %v519 = vpop.f32.mrf.mxu0
  %v520 = vadd.f32 0.0, %v519
  %521 = vdwg.mxu0
  %522 = vadd.xlane.f32.xlu0 %v483
  %v523 = vpop.xlane.xlu0 %522
  %524 = vadd.xlane.f32.xlu0 %v485
  %v525 = vpop.xlane.xlu0 %524
  %526 = vadd.xlane.f32.xlu0 %v488
  %v527 = vpop.xlane.xlu0 %526
  %528 = vadd.xlane.f32.xlu0 %v490
  %v529 = vpop.xlane.xlu0 %528
  %530 = vadd.xlane.f32.xlu0 %v493
  %v531 = vpop.xlane.xlu0 %530
  %532 = vadd.xlane.f32.xlu0 %v495
  %v533 = vpop.xlane.xlu0 %532
  %534 = vadd.xlane.f32.xlu0 %v498
  %v535 = vpop.xlane.xlu0 %534
  %536 = vadd.xlane.f32.xlu0 %v500
  %v537 = vpop.xlane.xlu0 %536
  %538 = vadd.xlane.f32.xlu0 %v503
  %v539 = vpop.xlane.xlu0 %538
  %540 = vadd.xlane.f32.xlu0 %v505
  %v541 = vpop.xlane.xlu0 %540
  %542 = vadd.xlane.f32.xlu0 %v508
  %v543 = vpop.xlane.xlu0 %542
  %544 = vadd.xlane.f32.xlu0 %v510
  %v545 = vpop.xlane.xlu0 %544
  %546 = vadd.xlane.f32.xlu0 %v513
  %v547 = vpop.xlane.xlu0 %546
  %548 = vadd.xlane.f32.xlu0 %v515
  %v549 = vpop.xlane.xlu0 %548
  %550 = vadd.xlane.f32.xlu0 %v518
  %v551 = vpop.xlane.xlu0 %550
  %552 = vadd.xlane.f32.xlu0 %v520
  %v553 = vpop.xlane.xlu0 %552
  %v554 = vadd.f32 %v523, 1.0
  %v555 = vadd.f32 %v525, 1.0
  %v556 = vadd.f32 %v527, 1.0
  %v557 = vadd.f32 %v529, 1.0
  %v558 = vadd.f32 %v531, 1.0
  %v559 = vadd.f32 %v533, 1.0
  %v560 = vadd.f32 %v535, 1.0
  %v561 = vadd.f32 %v537, 1.0
  %v562 = vadd.f32 %v539, 1.0
  %v563 = vadd.f32 %v541, 1.0
  %v564 = vadd.f32 %v543, 1.0
  %v565 = vadd.f32 %v545, 1.0
  %v566 = vadd.f32 %v547, 1.0
  %v567 = vadd.f32 %v549, 1.0
  %v568 = vadd.f32 %v551, 1.0
  %v569 = vadd.f32 %v553, 1.0
  %v570 = vrsqrt.pop %v554
  %v571 = vmul.f32 %v570, %v554
  %v572 = vmul.f32 %v571, %v570
  %v573 = vmul.f32 0.5, %v572
  %v574 = vsub.f32 1.5, %v573
  %v575 = vmul.f32 %v570, %v574
  %vm576 = vweird.f32 %v554
  %vm577 = vweird.f32 %v570
  %vm578 = vmor %vm576, %vm577
  %v579 = vsel %vm578, %v570, %v575
  %v580 = vrsqrt.pop %v555
  %v581 = vmul.f32 %v580, %v555
  %v582 = vmul.f32 %v581, %v580
  %v583 = vmul.f32 0.5, %v582
  %v584 = vsub.f32 1.5, %v583
  %v585 = vmul.f32 %v580, %v584
  %vm586 = vweird.f32 %v555
  %vm587 = vweird.f32 %v580
  %vm588 = vmor %vm586, %vm587
  %v589 = vsel %vm588, %v580, %v585
  %v590 = vrsqrt.pop %v556
  %v591 = vmul.f32 %v590, %v556
  %v592 = vmul.f32 %v591, %v590
  %v593 = vmul.f32 0.5, %v592
  %v594 = vsub.f32 1.5, %v593
  %v595 = vmul.f32 %v590, %v594
  %vm596 = vweird.f32 %v556
  %vm597 = vweird.f32 %v590
  %vm598 = vmor %vm596, %vm597
  %v599 = vsel %vm598, %v590, %v595
  %v600 = vrsqrt.pop %v557
  %v601 = vmul.f32 %v600, %v557
  %v602 = vmul.f32 %v601, %v600
  %v603 = vmul.f32 0.5, %v602
  %v604 = vsub.f32 1.5, %v603
  %v605 = vmul.f32 %v600, %v604
  %vm606 = vweird.f32 %v557
  %vm607 = vweird.f32 %v600
  %vm608 = vmor %vm606, %vm607
  %v609 = vsel %vm608, %v600, %v605
  %v610 = vrsqrt.pop %v558
  %v611 = vmul.f32 %v610, %v558
  %v612 = vmul.f32 %v611, %v610
  %v613 = vmul.f32 0.5, %v612
  %v614 = vsub.f32 1.5, %v613
  %v615 = vmul.f32 %v610, %v614
  %vm616 = vweird.f32 %v558
  %vm617 = vweird.f32 %v610
  %vm618 = vmor %vm616, %vm617
  %v619 = vsel %vm618, %v610, %v615
  %v620 = vrsqrt.pop %v559
  %v621 = vmul.f32 %v620, %v559
  %v622 = vmul.f32 %v621, %v620
  %v623 = vmul.f32 0.5, %v622
  %v624 = vsub.f32 1.5, %v623
  %v625 = vmul.f32 %v620, %v624
  %vm626 = vweird.f32 %v559
  %vm627 = vweird.f32 %v620
  %vm628 = vmor %vm626, %vm627
  %v629 = vsel %vm628, %v620, %v625
  %v630 = vrsqrt.pop %v560
  %v631 = vmul.f32 %v630, %v560
  %v632 = vmul.f32 %v631, %v630
  %v633 = vmul.f32 0.5, %v632
  %v634 = vsub.f32 1.5, %v633
  %v635 = vmul.f32 %v630, %v634
  %vm636 = vweird.f32 %v560
  %vm637 = vweird.f32 %v630
  %vm638 = vmor %vm636, %vm637
  %v639 = vsel %vm638, %v630, %v635
  %v640 = vrsqrt.pop %v561
  %v641 = vmul.f32 %v640, %v561
  %v642 = vmul.f32 %v641, %v640
  %v643 = vmul.f32 0.5, %v642
  %v644 = vsub.f32 1.5, %v643
  %v645 = vmul.f32 %v640, %v644
  %vm646 = vweird.f32 %v561
  %vm647 = vweird.f32 %v640
  %vm648 = vmor %vm646, %vm647
  %v649 = vsel %vm648, %v640, %v645
  %v650 = vrsqrt.pop %v562
  %v651 = vmul.f32 %v650, %v562
  %v652 = vmul.f32 %v651, %v650
  %v653 = vmul.f32 0.5, %v652
  %v654 = vsub.f32 1.5, %v653
  %v655 = vmul.f32 %v650, %v654
  %vm656 = vweird.f32 %v562
  %vm657 = vweird.f32 %v650
  %vm658 = vmor %vm656, %vm657
  %v659 = vsel %vm658, %v650, %v655
  %v660 = vrsqrt.pop %v563
  %v661 = vmul.f32 %v660, %v563
  %v662 = vmul.f32 %v661, %v660
  %v663 = vmul.f32 0.5, %v662
  %v664 = vsub.f32 1.5, %v663
  %v665 = vmul.f32 %v660, %v664
  %vm666 = vweird.f32 %v563
  %vm667 = vweird.f32 %v660
  %vm668 = vmor %vm666, %vm667
  %v669 = vsel %vm668, %v660, %v665
  %v670 = vrsqrt.pop %v564
  %v671 = vmul.f32 %v670, %v564
  %v672 = vmul.f32 %v671, %v670
  %v673 = vmul.f32 0.5, %v672
  %v674 = vsub.f32 1.5, %v673
  %v675 = vmul.f32 %v670, %v674
  %vm676 = vweird.f32 %v564
  %vm677 = vweird.f32 %v670
  %vm678 = vmor %vm676, %vm677
  %v679 = vsel %vm678, %v670, %v675
  %v680 = vrsqrt.pop %v565
  %v681 = vmul.f32 %v680, %v565
  %v682 = vmul.f32 %v681, %v680
  %v683 = vmul.f32 0.5, %v682
  %v684 = vsub.f32 1.5, %v683
  %v685 = vmul.f32 %v680, %v684
  %vm686 = vweird.f32 %v565
  %vm687 = vweird.f32 %v680
  %vm688 = vmor %vm686, %vm687
  %v689 = vsel %vm688, %v680, %v685
  %v690 = vrsqrt.pop %v566
  %v691 = vmul.f32 %v690, %v566
  %v692 = vmul.f32 %v691, %v690
  %v693 = vmul.f32 0.5, %v692
  %v694 = vsub.f32 1.5, %v693
  %v695 = vmul.f32 %v690, %v694
  %vm696 = vweird.f32 %v566
  %vm697 = vweird.f32 %v690
  %vm698 = vmor %vm696, %vm697
  %v699 = vsel %vm698, %v690, %v695
  %v700 = vrsqrt.pop %v567
  %v701 = vmul.f32 %v700, %v567
  %v702 = vmul.f32 %v701, %v700
  %v703 = vmul.f32 0.5, %v702
  %v704 = vsub.f32 1.5, %v703
  %v705 = vmul.f32 %v700, %v704
  %vm706 = vweird.f32 %v567
  %vm707 = vweird.f32 %v700
  %vm708 = vmor %vm706, %vm707
  %v709 = vsel %vm708, %v700, %v705
  %v710 = vrsqrt.pop %v568
  %v711 = vmul.f32 %v710, %v568
  %v712 = vmul.f32 %v711, %v710
  %v713 = vmul.f32 0.5, %v712
  %v714 = vsub.f32 1.5, %v713
  %v715 = vmul.f32 %v710, %v714
  %vm716 = vweird.f32 %v568
  %vm717 = vweird.f32 %v710
  %vm718 = vmor %vm716, %vm717
  %v719 = vsel %vm718, %v710, %v715
  %v720 = vrsqrt.pop %v569
  %v721 = vmul.f32 %v720, %v569
  %v722 = vmul.f32 %v721, %v720
  %v723 = vmul.f32 0.5, %v722
  %v724 = vsub.f32 1.5, %v723
  %v725 = vmul.f32 %v720, %v724
  %vm726 = vweird.f32 %v569
  %vm727 = vweird.f32 %v720
  %vm728 = vmor %vm726, %vm727
  %v729 = vsel %vm728, %v720, %v725
  %v730 = vmul.f32 %v579, %v579
  %v731 = vmul.f32 %v589, %v589
  %v732 = vmul.f32 %v599, %v599
  %v733 = vmul.f32 %v609, %v609
  %v734 = vmul.f32 %v619, %v619
  %v735 = vmul.f32 %v629, %v629
  %v736 = vmul.f32 %v639, %v639
  %v737 = vmul.f32 %v649, %v649
  %v738 = vmul.f32 %v659, %v659
  %v739 = vmul.f32 %v669, %v669
  %v740 = vmul.f32 %v679, %v679
  %v741 = vmul.f32 %v689, %v689
  %v742 = vmul.f32 %v699, %v699
  %v743 = vmul.f32 %v709, %v709
  %v744 = vmul.f32 %v719, %v719
  %v745 = vmul.f32 %v729, %v729
  %v746 = vpack.c.bf16 %v485, %v483
  %v747 = vpack.c.bf16 %v490, %v488
  %v748 = vpack.c.bf16 %v495, %v493
  %v749 = vpack.c.bf16 %v500, %v498
  %v750 = vpack.c.bf16 %v505, %v503
  %v751 = vpack.c.bf16 %v510, %v508
  %v752 = vpack.c.bf16 %v515, %v513
  %v753 = vpack.c.bf16 %v520, %v518
  %v754 = vld [vmem:[%s3] sm:$0xff]
  %v755 = vld [vmem:[%s3 + $0x8] sm:$0xff]
  %v756 = vld [vmem:[%s3 + $0x10] sm:$0xff]
  %v757 = vld [vmem:[%s3 + $0x18] sm:$0xff]
  %v758 = vld [vmem:[%s3 + $0x20] sm:$0xff]
  %v759 = vld [vmem:[%s3 + $0x28] sm:$0xff]
  %v760 = vld [vmem:[%s3 + $0x30] sm:$0xff]
  %v761 = vld [vmem:[%s3 + $0x38] sm:$0xff]
  %v762 = vld [vmem:[%s3 + $0x40] sm:$0xff]
  %v763 = vld [vmem:[%s3 + $0x48] sm:$0xff]
  %v764 = vld [vmem:[%s3 + $0x50] sm:$0xff]
  %v765 = vld [vmem:[%s3 + $0x58] sm:$0xff]
  %v766 = vld [vmem:[%s3 + $0x60] sm:$0xff]
  %v767 = vld [vmem:[%s3 + $0x68] sm:$0xff]
  %v768 = vld [vmem:[%s3 + $0x70] sm:$0xff]
  %v769 = vld [vmem:[%s3 + $0x78] sm:$0xff]
  %v770 = vpack.c.bf16 %v755, %v754
  %v771 = vpack.c.bf16 %v757, %v756
  %v772 = vpack.c.bf16 %v759, %v758
  %v773 = vpack.c.bf16 %v761, %v760
  %v774 = vpack.c.bf16 %v763, %v762
  %v775 = vpack.c.bf16 %v765, %v764
  %v776 = vpack.c.bf16 %v767, %v766
  %v777 = vpack.c.bf16 %v769, %v768
  %v778 = vld [vmem:[%s4] sm:$0xff]
  %v779 = vpack.c.bf16 %v778, %v778
  %vm780 = vcmask 64512
  %v782 = vsel %vm780, %v770, 0
  %v785 = vsel %vm780, %v771, 0
  %v788 = vsel %vm780, %v772, 0
  %v791 = vsel %vm780, %v773, 0
  %v794 = vsel %vm780, %v774, 0
  %v797 = vsel %vm780, %v775, 0
  %v800 = vsel %vm780, %v776, 0
  %v803 = vsel %vm780, %v777, 0
  %vm805 = vcmask 1043456
  %v807 = vsel %vm805, %v779, 0
  %809 = vmatpush.bf16.msra.mxu0 0
  %810 = vmatpush.bf16.msra.mxu0 0
  %811 = vmatpush.bf16.msra.mxu0 0
  %812 = vmatpush.bf16.msra.mxu0 0
  %813 = vmatpush.bf16.msra.mxu0 0
  %814 = vmatpush.bf16.msra.mxu0 0
  %815 = vmatpush.bf16.msra.mxu0 0
  %816 = vmatpush.bf16.msra.mxu0 %v807
  %817 = vmatmul.bf16.gmra.mxu0 %v782
  %v818 = vpop.f32.mrf.mxu0
  %v819 = vadd.f32 0.0, %v818
  %v820 = vpop.f32.mrf.mxu0
  %v821 = vadd.f32 0.0, %v820
  %822 = vmatmul.bf16.gmra.mxu0 %v785
  %v823 = vpop.f32.mrf.mxu0
  %v824 = vadd.f32 0.0, %v823
  %v825 = vpop.f32.mrf.mxu0
  %v826 = vadd.f32 0.0, %v825
  %827 = vmatmul.bf16.gmra.mxu0 %v788
  %v828 = vpop.f32.mrf.mxu0
  %v829 = vadd.f32 0.0, %v828
  %v830 = vpop.f32.mrf.mxu0
  %v831 = vadd.f32 0.0, %v830
  %832 = vmatmul.bf16.gmra.mxu0 %v791
  %v833 = vpop.f32.mrf.mxu0
  %v834 = vadd.f32 0.0, %v833
  %v835 = vpop.f32.mrf.mxu0
  %v836 = vadd.f32 0.0, %v835
  %837 = vmatmul.bf16.gmra.mxu0 %v794
  %v838 = vpop.f32.mrf.mxu0
  %v839 = vadd.f32 0.0, %v838
  %v840 = vpop.f32.mrf.mxu0
  %v841 = vadd.f32 0.0, %v840
  %842 = vmatmul.bf16.gmra.mxu0 %v797
  %v843 = vpop.f32.mrf.mxu0
  %v844 = vadd.f32 0.0, %v843
  %v845 = vpop.f32.mrf.mxu0
  %v846 = vadd.f32 0.0, %v845
  %847 = vmatmul.bf16.gmra.mxu0 %v800
  %v848 = vpop.f32.mrf.mxu0
  %v849 = vadd.f32 0.0, %v848
  %v850 = vpop.f32.mrf.mxu0
  %v851 = vadd.f32 0.0, %v850
  %852 = vmatmul.bf16.gmra.mxu0 %v803
  %v853 = vpop.f32.mrf.mxu0
  %v854 = vadd.f32 0.0, %v853
  %v855 = vpop.f32.mrf.mxu0
  %v856 = vadd.f32 0.0, %v855
  %857 = vdwg.mxu0
  %v858 = vmul.f32 %v579, %v819
  %v859 = vmul.f32 %v589, %v821
  %v860 = vmul.f32 %v599, %v824
  %v861 = vmul.f32 %v609, %v826
  %v862 = vmul.f32 %v619, %v829
  %v863 = vmul.f32 %v629, %v831
  %v864 = vmul.f32 %v639, %v834
  %v865 = vmul.f32 %v649, %v836
  %v866 = vmul.f32 %v659, %v839
  %v867 = vmul.f32 %v669, %v841
  %v868 = vmul.f32 %v679, %v844
  %v869 = vmul.f32 %v689, %v846
  %v870 = vmul.f32 %v699, %v849
  %v871 = vmul.f32 %v709, %v851
  %v872 = vmul.f32 %v719, %v854
  %v873 = vmul.f32 %v729, %v856
  %v874 = vpack.c.bf16 %v859, %v858
  %v875 = vpack.c.bf16 %v861, %v860
  %v876 = vpack.c.bf16 %v863, %v862
  %v877 = vpack.c.bf16 %v865, %v864
  %v878 = vpack.c.bf16 %v867, %v866
  %v879 = vpack.c.bf16 %v869, %v868
  %v880 = vpack.c.bf16 %v871, %v870
  %v881 = vpack.c.bf16 %v873, %v872
  %882 = vmatpush.bf16.msra.mxu0 %v881
  %883 = vmatpush.bf16.msra.mxu0 %v880
  %884 = vmatpush.bf16.msra.mxu0 %v879
  %885 = vmatpush.bf16.msra.mxu0 %v878
  %886 = vmatpush.bf16.msra.mxu0 %v877
  %887 = vmatpush.bf16.msra.mxu0 %v876
  %888 = vmatpush.bf16.msra.mxu0 %v875
  %889 = vmatpush.bf16.msra.mxu0 %v874
  %890 = vmatmul.bf16.gmra.mxu0 %v746
  %v891 = vpop.f32.mrf.mxu0
  %v892 = vadd.f32 0.0, %v891
  %v893 = vpop.f32.mrf.mxu0
  %v894 = vadd.f32 0.0, %v893
  %895 = vmatmul.bf16.gmra.mxu0 %v747
  %v896 = vpop.f32.mrf.mxu0
  %v897 = vadd.f32 0.0, %v896
  %v898 = vpop.f32.mrf.mxu0
  %v899 = vadd.f32 0.0, %v898
  %900 = vmatmul.bf16.gmra.mxu0 %v748
  %v901 = vpop.f32.mrf.mxu0
  %v902 = vadd.f32 0.0, %v901
  %v903 = vpop.f32.mrf.mxu0
  %v904 = vadd.f32 0.0, %v903
  %905 = vmatmul.bf16.gmra.mxu0 %v749
  %v906 = vpop.f32.mrf.mxu0
  %v907 = vadd.f32 0.0, %v906
  %v908 = vpop.f32.mrf.mxu0
  %v909 = vadd.f32 0.0, %v908
  %910 = vmatmul.bf16.gmra.mxu0 %v750
  %v911 = vpop.f32.mrf.mxu0
  %v912 = vadd.f32 0.0, %v911
  %v913 = vpop.f32.mrf.mxu0
  %v914 = vadd.f32 0.0, %v913
  %915 = vmatmul.bf16.gmra.mxu0 %v751
  %v916 = vpop.f32.mrf.mxu0
  %v917 = vadd.f32 0.0, %v916
  %v918 = vpop.f32.mrf.mxu0
  %v919 = vadd.f32 0.0, %v918
  %920 = vmatmul.bf16.gmra.mxu0 %v752
  %v921 = vpop.f32.mrf.mxu0
  %v922 = vadd.f32 0.0, %v921
  %v923 = vpop.f32.mrf.mxu0
  %v924 = vadd.f32 0.0, %v923
  %925 = vmatmul.bf16.gmra.mxu0 %v753
  %v926 = vpop.f32.mrf.mxu0
  %v927 = vadd.f32 0.0, %v926
  %v928 = vpop.f32.mrf.mxu0
  %v929 = vadd.f32 0.0, %v928
  %930 = vdwg.mxu0
  %v931 = vmul.f32 %v579, %v892
  %v932 = vmul.f32 %v589, %v894
  %v933 = vmul.f32 %v599, %v897
  %v934 = vmul.f32 %v609, %v899
  %v935 = vmul.f32 %v619, %v902
  %v936 = vmul.f32 %v629, %v904
  %v937 = vmul.f32 %v639, %v907
  %v938 = vmul.f32 %v649, %v909
  %v939 = vmul.f32 %v659, %v912
  %v940 = vmul.f32 %v669, %v914
  %v941 = vmul.f32 %v679, %v917
  %v942 = vmul.f32 %v689, %v919
  %v943 = vmul.f32 %v699, %v922
  %v944 = vmul.f32 %v709, %v924
  %v945 = vmul.f32 %v719, %v927
  %v946 = vmul.f32 %v729, %v929
  %v947 = vmul.f32 %v730, %v819
  %v948 = vmul.f32 %v731, %v821
  %v949 = vmul.f32 %v732, %v824
  %v950 = vmul.f32 %v733, %v826
  %v951 = vmul.f32 %v734, %v829
  %v952 = vmul.f32 %v735, %v831
  %v953 = vmul.f32 %v736, %v834
  %v954 = vmul.f32 %v737, %v836
  %v955 = vmul.f32 %v738, %v839
  %v956 = vmul.f32 %v739, %v841
  %v957 = vmul.f32 %v740, %v844
  %v958 = vmul.f32 %v741, %v846
  %v959 = vmul.f32 %v742, %v849
  %v960 = vmul.f32 %v743, %v851
  %v961 = vmul.f32 %v744, %v854
  %v962 = vmul.f32 %v745, %v856
  %v963 = vadd.f32 %v931, %v947
  %v964 = vadd.f32 %v932, %v948
  %v965 = vadd.f32 %v933, %v949
  %v966 = vadd.f32 %v934, %v950
  %v967 = vadd.f32 %v935, %v951
  %v968 = vadd.f32 %v936, %v952
  %v969 = vadd.f32 %v937, %v953
  %v970 = vadd.f32 %v938, %v954
  %v971 = vadd.f32 %v939, %v955
  %v972 = vadd.f32 %v940, %v956
  %v973 = vadd.f32 %v941, %v957
  %v974 = vadd.f32 %v942, %v958
  %v975 = vadd.f32 %v943, %v959
  %v976 = vadd.f32 %v944, %v960
  %v977 = vadd.f32 %v945, %v961
  %v978 = vadd.f32 %v946, %v962
  %v979 = vld [vmem:[%s5] sm:$0x1]
  %v981 = vperm.slane %v979, 0
  %v983 = vadd.f32 %v963, %v981
  %v984 = vadd.f32 %v964, %v981
  %v985 = vadd.f32 %v965, %v981
  %v986 = vadd.f32 %v966, %v981
  %v987 = vadd.f32 %v967, %v981
  %v988 = vadd.f32 %v968, %v981
  %v989 = vadd.f32 %v969, %v981
  %v990 = vadd.f32 %v970, %v981
  %v991 = vadd.f32 %v971, %v981
  %v992 = vadd.f32 %v972, %v981
  %v993 = vadd.f32 %v973, %v981
  %v994 = vadd.f32 %v974, %v981
  %v995 = vadd.f32 %v975, %v981
  %v996 = vadd.f32 %v976, %v981
  %v997 = vadd.f32 %v977, %v981
  %v998 = vadd.f32 %v978, %v981
  %v999 = vmax.f32 %v983, 0.0
  %v1000 = vmax.f32 %v984, 0.0
  %v1001 = vmax.f32 %v985, 0.0
  %v1002 = vmax.f32 %v986, 0.0
  %v1003 = vmax.f32 %v987, 0.0
  %v1004 = vmax.f32 %v988, 0.0
  %v1005 = vmax.f32 %v989, 0.0
  %v1006 = vmax.f32 %v990, 0.0
  %v1007 = vmax.f32 %v991, 0.0
  %v1008 = vmax.f32 %v992, 0.0
  %v1009 = vmax.f32 %v993, 0.0
  %v1010 = vmax.f32 %v994, 0.0
  %v1011 = vmax.f32 %v995, 0.0
  %v1012 = vmax.f32 %v996, 0.0
  %v1013 = vmax.f32 %v997, 0.0
  %v1014 = vmax.f32 %v998, 0.0
  %v1015 = vpack.c.bf16 %v1000, %v999
  %v1016 = vpack.c.bf16 %v1002, %v1001
  %v1017 = vpack.c.bf16 %v1004, %v1003
  %v1018 = vpack.c.bf16 %v1006, %v1005
  %v1019 = vpack.c.bf16 %v1008, %v1007
  %v1020 = vpack.c.bf16 %v1010, %v1009
  %v1021 = vpack.c.bf16 %v1012, %v1011
  %v1022 = vpack.c.bf16 %v1014, %v1013
  %v1023 = vld [vmem:[%s6] sm:$0xff]
  %v1024 = vld [vmem:[%s6 + $0x8] sm:$0xff]
  %v1025 = vpack.c.bf16 %v1024, %v1023
  %vm1026 = vcmask 130048
  %v1028 = vsel %vm1026, %v1015, 0
  %v1031 = vsel %vm1026, %v1016, 0
  %v1034 = vsel %vm1026, %v1017, 0
  %v1037 = vsel %vm1026, %v1018, 0
  %v1040 = vsel %vm1026, %v1019, 0
  %v1043 = vsel %vm1026, %v1020, 0
  %v1046 = vsel %vm1026, %v1021, 0
  %v1049 = vsel %vm1026, %v1022, 0
  %1051 = vmatpush.bf16.msra.mxu0 0
  %1052 = vmatpush.bf16.msra.mxu0 0
  %1053 = vmatpush.bf16.msra.mxu0 0
  %1054 = vmatpush.bf16.msra.mxu0 0
  %1055 = vmatpush.bf16.msra.mxu0 0
  %1056 = vmatpush.bf16.msra.mxu0 0
  %1057 = vmatpush.bf16.msra.mxu0 0
  %1058 = vmatpush.bf16.msra.mxu0 %v1025
  %1059 = vmatmul.bf16.gmra.mxu0 %v1028
  %v1060 = vpop.f32.mrf.mxu0
  %v1061 = vadd.f32 0.0, %v1060
  %v1062 = vpop.f32.mrf.mxu0
  %v1063 = vadd.f32 0.0, %v1062
  %1064 = vmatmul.bf16.gmra.mxu0 %v1031
  %v1065 = vpop.f32.mrf.mxu0
  %v1066 = vadd.f32 0.0, %v1065
  %v1067 = vpop.f32.mrf.mxu0
  %v1068 = vadd.f32 0.0, %v1067
  %1069 = vmatmul.bf16.gmra.mxu0 %v1034
  %v1070 = vpop.f32.mrf.mxu0
  %v1071 = vadd.f32 0.0, %v1070
  %v1072 = vpop.f32.mrf.mxu0
  %v1073 = vadd.f32 0.0, %v1072
  %1074 = vmatmul.bf16.gmra.mxu0 %v1037
  %v1075 = vpop.f32.mrf.mxu0
  %v1076 = vadd.f32 0.0, %v1075
  %v1077 = vpop.f32.mrf.mxu0
  %v1078 = vadd.f32 0.0, %v1077
  %1079 = vmatmul.bf16.gmra.mxu0 %v1040
  %v1080 = vpop.f32.mrf.mxu0
  %v1081 = vadd.f32 0.0, %v1080
  %v1082 = vpop.f32.mrf.mxu0
  %v1083 = vadd.f32 0.0, %v1082
  %1084 = vmatmul.bf16.gmra.mxu0 %v1043
  %v1085 = vpop.f32.mrf.mxu0
  %v1086 = vadd.f32 0.0, %v1085
  %v1087 = vpop.f32.mrf.mxu0
  %v1088 = vadd.f32 0.0, %v1087
  %1089 = vmatmul.bf16.gmra.mxu0 %v1046
  %v1090 = vpop.f32.mrf.mxu0
  %v1091 = vadd.f32 0.0, %v1090
  %v1092 = vpop.f32.mrf.mxu0
  %v1093 = vadd.f32 0.0, %v1092
  %1094 = vmatmul.bf16.gmra.mxu0 %v1049
  %v1095 = vpop.f32.mrf.mxu0
  %v1096 = vadd.f32 0.0, %v1095
  %v1097 = vpop.f32.mrf.mxu0
  %v1098 = vadd.f32 0.0, %v1097
  %1099 = vdwg.mxu0
  %v1100 = vmul.f32 %v579, %v1061
  %v1101 = vmul.f32 %v589, %v1063
  %v1102 = vmul.f32 %v599, %v1066
  %v1103 = vmul.f32 %v609, %v1068
  %v1104 = vmul.f32 %v619, %v1071
  %v1105 = vmul.f32 %v629, %v1073
  %v1106 = vmul.f32 %v639, %v1076
  %v1107 = vmul.f32 %v649, %v1078
  %v1108 = vmul.f32 %v659, %v1081
  %v1109 = vmul.f32 %v669, %v1083
  %v1110 = vmul.f32 %v679, %v1086
  %v1111 = vmul.f32 %v689, %v1088
  %v1112 = vmul.f32 %v699, %v1091
  %v1113 = vmul.f32 %v709, %v1093
  %v1114 = vmul.f32 %v719, %v1096
  %v1115 = vmul.f32 %v729, %v1098
  %v1116 = vpack.c.bf16 %v1101, %v1100
  %v1117 = vpack.c.bf16 %v1103, %v1102
  %v1118 = vpack.c.bf16 %v1105, %v1104
  %v1119 = vpack.c.bf16 %v1107, %v1106
  %v1120 = vpack.c.bf16 %v1109, %v1108
  %v1121 = vpack.c.bf16 %v1111, %v1110
  %v1122 = vpack.c.bf16 %v1113, %v1112
  %v1123 = vpack.c.bf16 %v1115, %v1114
  %1124 = vmatpush.bf16.msra.mxu0 %v1123
  %1125 = vmatpush.bf16.msra.mxu0 %v1122
  %1126 = vmatpush.bf16.msra.mxu0 %v1121
  %1127 = vmatpush.bf16.msra.mxu0 %v1120
  %1128 = vmatpush.bf16.msra.mxu0 %v1119
  %1129 = vmatpush.bf16.msra.mxu0 %v1118
  %1130 = vmatpush.bf16.msra.mxu0 %v1117
  %1131 = vmatpush.bf16.msra.mxu0 %v1116
  %1132 = vmatmul.bf16.gmra.mxu0 %v746
  %v1133 = vpop.f32.mrf.mxu0
  %v1134 = vadd.f32 0.0, %v1133
  %v1135 = vpop.f32.mrf.mxu0
  %v1136 = vadd.f32 0.0, %v1135
  %1137 = vmatmul.bf16.gmra.mxu0 %v747
  %v1138 = vpop.f32.mrf.mxu0
  %v1139 = vadd.f32 0.0, %v1138
  %v1140 = vpop.f32.mrf.mxu0
  %v1141 = vadd.f32 0.0, %v1140
  %1142 = vmatmul.bf16.gmra.mxu0 %v748
  %v1143 = vpop.f32.mrf.mxu0
  %v1144 = vadd.f32 0.0, %v1143
  %v1145 = vpop.f32.mrf.mxu0
  %v1146 = vadd.f32 0.0, %v1145
  %1147 = vmatmul.bf16.gmra.mxu0 %v749
  %v1148 = vpop.f32.mrf.mxu0
  %v1149 = vadd.f32 0.0, %v1148
  %v1150 = vpop.f32.mrf.mxu0
  %v1151 = vadd.f32 0.0, %v1150
  %1152 = vmatmul.bf16.gmra.mxu0 %v750
  %v1153 = vpop.f32.mrf.mxu0
  %v1154 = vadd.f32 0.0, %v1153
  %v1155 = vpop.f32.mrf.mxu0
  %v1156 = vadd.f32 0.0, %v1155
  %1157 = vmatmul.bf16.gmra.mxu0 %v751
  %v1158 = vpop.f32.mrf.mxu0
  %v1159 = vadd.f32 0.0, %v1158
  %v1160 = vpop.f32.mrf.mxu0
  %v1161 = vadd.f32 0.0, %v1160
  %1162 = vmatmul.bf16.gmra.mxu0 %v752
  %v1163 = vpop.f32.mrf.mxu0
  %v1164 = vadd.f32 0.0, %v1163
  %v1165 = vpop.f32.mrf.mxu0
  %v1166 = vadd.f32 0.0, %v1165
  %1167 = vmatmul.bf16.gmra.mxu0 %v753
  %v1168 = vpop.f32.mrf.mxu0
  %v1169 = vadd.f32 0.0, %v1168
  %v1170 = vpop.f32.mrf.mxu0
  %v1171 = vadd.f32 0.0, %v1170
  %1172 = vdwg.mxu0
  %v1173 = vmul.f32 %v579, %v1134
  %v1174 = vmul.f32 %v589, %v1136
  %v1175 = vmul.f32 %v599, %v1139
  %v1176 = vmul.f32 %v609, %v1141
  %v1177 = vmul.f32 %v619, %v1144
  %v1178 = vmul.f32 %v629, %v1146
  %v1179 = vmul.f32 %v639, %v1149
  %v1180 = vmul.f32 %v649, %v1151
  %v1181 = vmul.f32 %v659, %v1154
  %v1182 = vmul.f32 %v669, %v1156
  %v1183 = vmul.f32 %v679, %v1159
  %v1184 = vmul.f32 %v689, %v1161
  %v1185 = vmul.f32 %v699, %v1164
  %v1186 = vmul.f32 %v709, %v1166
  %v1187 = vmul.f32 %v719, %v1169
  %v1188 = vmul.f32 %v729, %v1171
  %v1189 = vmul.f32 %v730, %v1061
  %v1190 = vmul.f32 %v731, %v1063
  %v1191 = vmul.f32 %v732, %v1066
  %v1192 = vmul.f32 %v733, %v1068
  %v1193 = vmul.f32 %v734, %v1071
  %v1194 = vmul.f32 %v735, %v1073
  %v1195 = vmul.f32 %v736, %v1076
  %v1196 = vmul.f32 %v737, %v1078
  %v1197 = vmul.f32 %v738, %v1081
  %v1198 = vmul.f32 %v739, %v1083
  %v1199 = vmul.f32 %v740, %v1086
  %v1200 = vmul.f32 %v741, %v1088
  %v1201 = vmul.f32 %v742, %v1091
  %v1202 = vmul.f32 %v743, %v1093
  %v1203 = vmul.f32 %v744, %v1096
  %v1204 = vmul.f32 %v745, %v1098
  %v1205 = vadd.f32 %v1173, %v1189
  %v1206 = vadd.f32 %v1174, %v1190
  %v1207 = vadd.f32 %v1175, %v1191
  %v1208 = vadd.f32 %v1176, %v1192
  %v1209 = vadd.f32 %v1177, %v1193
  %v1210 = vadd.f32 %v1178, %v1194
  %v1211 = vadd.f32 %v1179, %v1195
  %v1212 = vadd.f32 %v1180, %v1196
  %v1213 = vadd.f32 %v1181, %v1197
  %v1214 = vadd.f32 %v1182, %v1198
  %v1215 = vadd.f32 %v1183, %v1199
  %v1216 = vadd.f32 %v1184, %v1200
  %v1217 = vadd.f32 %v1185, %v1201
  %v1218 = vadd.f32 %v1186, %v1202
  %v1219 = vadd.f32 %v1187, %v1203
  %v1220 = vadd.f32 %v1188, %v1204
  %v1221 = vld [vmem:[%s7] sm:$0x1]
  %v1223 = vperm.slane %v1221, 0
  %v1225 = vadd.f32 %v1205, %v1223
  %v1226 = vadd.f32 %v1206, %v1223
  %v1227 = vadd.f32 %v1207, %v1223
  %v1228 = vadd.f32 %v1208, %v1223
  %v1229 = vadd.f32 %v1209, %v1223
  %v1230 = vadd.f32 %v1210, %v1223
  %v1231 = vadd.f32 %v1211, %v1223
  %v1232 = vadd.f32 %v1212, %v1223
  %v1233 = vadd.f32 %v1213, %v1223
  %v1234 = vadd.f32 %v1214, %v1223
  %v1235 = vadd.f32 %v1215, %v1223
  %v1236 = vadd.f32 %v1216, %v1223
  %v1237 = vadd.f32 %v1217, %v1223
  %v1238 = vadd.f32 %v1218, %v1223
  %v1239 = vadd.f32 %v1219, %v1223
  %v1240 = vadd.f32 %v1220, %v1223
  %v1241 = vmax.f32 %v1225, 0.0
  %v1242 = vmax.f32 %v1226, 0.0
  %v1243 = vmax.f32 %v1227, 0.0
  %v1244 = vmax.f32 %v1228, 0.0
  %v1245 = vmax.f32 %v1229, 0.0
  %v1246 = vmax.f32 %v1230, 0.0
  %v1247 = vmax.f32 %v1231, 0.0
  %v1248 = vmax.f32 %v1232, 0.0
  %v1249 = vmax.f32 %v1233, 0.0
  %v1250 = vmax.f32 %v1234, 0.0
  %v1251 = vmax.f32 %v1235, 0.0
  %v1252 = vmax.f32 %v1236, 0.0
  %v1253 = vmax.f32 %v1237, 0.0
  %v1254 = vmax.f32 %v1238, 0.0
  %v1255 = vmax.f32 %v1239, 0.0
  %v1256 = vmax.f32 %v1240, 0.0
  %v1257 = vpack.c.bf16 %v1242, %v1241
  %v1258 = vpack.c.bf16 %v1244, %v1243
  %v1259 = vpack.c.bf16 %v1246, %v1245
  %v1260 = vpack.c.bf16 %v1248, %v1247
  %v1261 = vpack.c.bf16 %v1250, %v1249
  %v1262 = vpack.c.bf16 %v1252, %v1251
  %v1263 = vpack.c.bf16 %v1254, %v1253
  %v1264 = vpack.c.bf16 %v1256, %v1255
  %v1265 = vld [vmem:[%s8] sm:$0xff]
  %v1266 = vld [vmem:[%s8 + $0x8] sm:$0xff]
  %v1267 = vld [vmem:[%s8 + $0x10] sm:$0xff]
  %v1268 = vld [vmem:[%s8 + $0x18] sm:$0xff]
  %v1269 = vpack.c.bf16 %v1266, %v1265
  %v1270 = vpack.c.bf16 %v1268, %v1267
  %vm1271 = vcmask 261120
  %v1273 = vsel %vm1271, %v1257, 0
  %v1276 = vsel %vm1271, %v1258, 0
  %v1279 = vsel %vm1271, %v1259, 0
  %v1282 = vsel %vm1271, %v1260, 0
  %v1285 = vsel %vm1271, %v1261, 0
  %v1288 = vsel %vm1271, %v1262, 0
  %v1291 = vsel %vm1271, %v1263, 0
  %v1294 = vsel %vm1271, %v1264, 0
  %1296 = vmatpush.bf16.msra.mxu0 0
  %1297 = vmatpush.bf16.msra.mxu0 0
  %1298 = vmatpush.bf16.msra.mxu0 0
  %1299 = vmatpush.bf16.msra.mxu0 0
  %1300 = vmatpush.bf16.msra.mxu0 0
  %1301 = vmatpush.bf16.msra.mxu0 0
  %1302 = vmatpush.bf16.msra.mxu0 %v1270
  %1303 = vmatpush.bf16.msra.mxu0 %v1269
  %1304 = vmatmul.bf16.gmra.mxu0 %v1273
  %v1305 = vpop.f32.mrf.mxu0
  %v1306 = vadd.f32 0.0, %v1305
  %v1307 = vpop.f32.mrf.mxu0
  %v1308 = vadd.f32 0.0, %v1307
  %1309 = vmatmul.bf16.gmra.mxu0 %v1276
  %v1310 = vpop.f32.mrf.mxu0
  %v1311 = vadd.f32 0.0, %v1310
  %v1312 = vpop.f32.mrf.mxu0
  %v1313 = vadd.f32 0.0, %v1312
  %1314 = vmatmul.bf16.gmra.mxu0 %v1279
  %v1315 = vpop.f32.mrf.mxu0
  %v1316 = vadd.f32 0.0, %v1315
  %v1317 = vpop.f32.mrf.mxu0
  %v1318 = vadd.f32 0.0, %v1317
  %1319 = vmatmul.bf16.gmra.mxu0 %v1282
  %v1320 = vpop.f32.mrf.mxu0
  %v1321 = vadd.f32 0.0, %v1320
  %v1322 = vpop.f32.mrf.mxu0
  %v1323 = vadd.f32 0.0, %v1322
  %1324 = vmatmul.bf16.gmra.mxu0 %v1285
  %v1325 = vpop.f32.mrf.mxu0
  %v1326 = vadd.f32 0.0, %v1325
  %v1327 = vpop.f32.mrf.mxu0
  %v1328 = vadd.f32 0.0, %v1327
  %1329 = vmatmul.bf16.gmra.mxu0 %v1288
  %v1330 = vpop.f32.mrf.mxu0
  %v1331 = vadd.f32 0.0, %v1330
  %v1332 = vpop.f32.mrf.mxu0
  %v1333 = vadd.f32 0.0, %v1332
  %1334 = vmatmul.bf16.gmra.mxu0 %v1291
  %v1335 = vpop.f32.mrf.mxu0
  %v1336 = vadd.f32 0.0, %v1335
  %v1337 = vpop.f32.mrf.mxu0
  %v1338 = vadd.f32 0.0, %v1337
  %1339 = vmatmul.bf16.gmra.mxu0 %v1294
  %v1340 = vpop.f32.mrf.mxu0
  %v1341 = vadd.f32 0.0, %v1340
  %v1342 = vpop.f32.mrf.mxu0
  %v1343 = vadd.f32 0.0, %v1342
  %1344 = vdwg.mxu0
  %v1345 = vmul.f32 %v579, %v1306
  %v1346 = vmul.f32 %v589, %v1308
  %v1347 = vmul.f32 %v599, %v1311
  %v1348 = vmul.f32 %v609, %v1313
  %v1349 = vmul.f32 %v619, %v1316
  %v1350 = vmul.f32 %v629, %v1318
  %v1351 = vmul.f32 %v639, %v1321
  %v1352 = vmul.f32 %v649, %v1323
  %v1353 = vmul.f32 %v659, %v1326
  %v1354 = vmul.f32 %v669, %v1328
  %v1355 = vmul.f32 %v679, %v1331
  %v1356 = vmul.f32 %v689, %v1333
  %v1357 = vmul.f32 %v699, %v1336
  %v1358 = vmul.f32 %v709, %v1338
  %v1359 = vmul.f32 %v719, %v1341
  %v1360 = vmul.f32 %v729, %v1343
  %v1361 = vpack.c.bf16 %v1346, %v1345
  %v1362 = vpack.c.bf16 %v1348, %v1347
  %v1363 = vpack.c.bf16 %v1350, %v1349
  %v1364 = vpack.c.bf16 %v1352, %v1351
  %v1365 = vpack.c.bf16 %v1354, %v1353
  %v1366 = vpack.c.bf16 %v1356, %v1355
  %v1367 = vpack.c.bf16 %v1358, %v1357
  %v1368 = vpack.c.bf16 %v1360, %v1359
  %1369 = vmatpush.bf16.msra.mxu0 %v1368
  %1370 = vmatpush.bf16.msra.mxu0 %v1367
  %1371 = vmatpush.bf16.msra.mxu0 %v1366
  %1372 = vmatpush.bf16.msra.mxu0 %v1365
  %1373 = vmatpush.bf16.msra.mxu0 %v1364
  %1374 = vmatpush.bf16.msra.mxu0 %v1363
  %1375 = vmatpush.bf16.msra.mxu0 %v1362
  %1376 = vmatpush.bf16.msra.mxu0 %v1361
  %1377 = vmatmul.bf16.gmra.mxu0 %v746
  %v1378 = vpop.f32.mrf.mxu0
  %v1379 = vadd.f32 0.0, %v1378
  %v1380 = vpop.f32.mrf.mxu0
  %v1381 = vadd.f32 0.0, %v1380
  %1382 = vmatmul.bf16.gmra.mxu0 %v747
  %v1383 = vpop.f32.mrf.mxu0
  %v1384 = vadd.f32 0.0, %v1383
  %v1385 = vpop.f32.mrf.mxu0
  %v1386 = vadd.f32 0.0, %v1385
  %1387 = vmatmul.bf16.gmra.mxu0 %v748
  %v1388 = vpop.f32.mrf.mxu0
  %v1389 = vadd.f32 0.0, %v1388
  %v1390 = vpop.f32.mrf.mxu0
  %v1391 = vadd.f32 0.0, %v1390
  %1392 = vmatmul.bf16.gmra.mxu0 %v749
  %v1393 = vpop.f32.mrf.mxu0
  %v1394 = vadd.f32 0.0, %v1393
  %v1395 = vpop.f32.mrf.mxu0
  %v1396 = vadd.f32 0.0, %v1395
  %1397 = vmatmul.bf16.gmra.mxu0 %v750
  %v1398 = vpop.f32.mrf.mxu0
  %v1399 = vadd.f32 0.0, %v1398
  %v1400 = vpop.f32.mrf.mxu0
  %v1401 = vadd.f32 0.0, %v1400
  %1402 = vmatmul.bf16.gmra.mxu0 %v751
  %v1403 = vpop.f32.mrf.mxu0
  %v1404 = vadd.f32 0.0, %v1403
  %v1405 = vpop.f32.mrf.mxu0
  %v1406 = vadd.f32 0.0, %v1405
  %1407 = vmatmul.bf16.gmra.mxu0 %v752
  %v1408 = vpop.f32.mrf.mxu0
  %v1409 = vadd.f32 0.0, %v1408
  %v1410 = vpop.f32.mrf.mxu0
  %v1411 = vadd.f32 0.0, %v1410
  %1412 = vmatmul.bf16.gmra.mxu0 %v753
  %v1413 = vpop.f32.mrf.mxu0
  %v1414 = vadd.f32 0.0, %v1413
  %v1415 = vpop.f32.mrf.mxu0
  %v1416 = vadd.f32 0.0, %v1415
  %1417 = vdwg.mxu0
  %v1418 = vmul.f32 %v579, %v1379
  %v1419 = vmul.f32 %v589, %v1381
  %v1420 = vmul.f32 %v599, %v1384
  %v1421 = vmul.f32 %v609, %v1386
  %v1422 = vmul.f32 %v619, %v1389
  %v1423 = vmul.f32 %v629, %v1391
  %v1424 = vmul.f32 %v639, %v1394
  %v1425 = vmul.f32 %v649, %v1396
  %v1426 = vmul.f32 %v659, %v1399
  %v1427 = vmul.f32 %v669, %v1401
  %v1428 = vmul.f32 %v679, %v1404
  %v1429 = vmul.f32 %v689, %v1406
  %v1430 = vmul.f32 %v699, %v1409
  %v1431 = vmul.f32 %v709, %v1411
  %v1432 = vmul.f32 %v719, %v1414
  %v1433 = vmul.f32 %v729, %v1416
  %v1434 = vmul.f32 %v730, %v1306
  %v1435 = vmul.f32 %v731, %v1308
  %v1436 = vmul.f32 %v732, %v1311
  %v1437 = vmul.f32 %v733, %v1313
  %v1438 = vmul.f32 %v734, %v1316
  %v1439 = vmul.f32 %v735, %v1318
  %v1440 = vmul.f32 %v736, %v1321
  %v1441 = vmul.f32 %v737, %v1323
  %v1442 = vmul.f32 %v738, %v1326
  %v1443 = vmul.f32 %v739, %v1328
  %v1444 = vmul.f32 %v740, %v1331
  %v1445 = vmul.f32 %v741, %v1333
  %v1446 = vmul.f32 %v742, %v1336
  %v1447 = vmul.f32 %v743, %v1338
  %v1448 = vmul.f32 %v744, %v1341
  %v1449 = vmul.f32 %v745, %v1343
  %v1450 = vadd.f32 %v1418, %v1434
  %v1451 = vadd.f32 %v1419, %v1435
  %v1452 = vadd.f32 %v1420, %v1436
  %v1453 = vadd.f32 %v1421, %v1437
  %v1454 = vadd.f32 %v1422, %v1438
  %v1455 = vadd.f32 %v1423, %v1439
  %v1456 = vadd.f32 %v1424, %v1440
  %v1457 = vadd.f32 %v1425, %v1441
  %v1458 = vadd.f32 %v1426, %v1442
  %v1459 = vadd.f32 %v1427, %v1443
  %v1460 = vadd.f32 %v1428, %v1444
  %v1461 = vadd.f32 %v1429, %v1445
  %v1462 = vadd.f32 %v1430, %v1446
  %v1463 = vadd.f32 %v1431, %v1447
  %v1464 = vadd.f32 %v1432, %v1448
  %v1465 = vadd.f32 %v1433, %v1449
  %v1466 = vld [vmem:[%s9] sm:$0x1]
  %v1468 = vperm.slane %v1466, 0
  %v1470 = vadd.f32 %v1450, %v1468
  %v1471 = vadd.f32 %v1451, %v1468
  %v1472 = vadd.f32 %v1452, %v1468
  %v1473 = vadd.f32 %v1453, %v1468
  %v1474 = vadd.f32 %v1454, %v1468
  %v1475 = vadd.f32 %v1455, %v1468
  %v1476 = vadd.f32 %v1456, %v1468
  %v1477 = vadd.f32 %v1457, %v1468
  %v1478 = vadd.f32 %v1458, %v1468
  %v1479 = vadd.f32 %v1459, %v1468
  %v1480 = vadd.f32 %v1460, %v1468
  %v1481 = vadd.f32 %v1461, %v1468
  %v1482 = vadd.f32 %v1462, %v1468
  %v1483 = vadd.f32 %v1463, %v1468
  %v1484 = vadd.f32 %v1464, %v1468
  %v1485 = vadd.f32 %v1465, %v1468
  %v1486 = vxor.u32 %v1470, 2147483648
  %v1487 = vxor.u32 %v1471, 2147483648
  %v1488 = vxor.u32 %v1472, 2147483648
  %v1489 = vxor.u32 %v1473, 2147483648
  %v1490 = vxor.u32 %v1474, 2147483648
  %v1491 = vxor.u32 %v1475, 2147483648
  %v1492 = vxor.u32 %v1476, 2147483648
  %v1493 = vxor.u32 %v1477, 2147483648
  %v1494 = vxor.u32 %v1478, 2147483648
  %v1495 = vxor.u32 %v1479, 2147483648
  %v1496 = vxor.u32 %v1480, 2147483648
  %v1497 = vxor.u32 %v1481, 2147483648
  %v1498 = vxor.u32 %v1482, 2147483648
  %v1499 = vxor.u32 %v1483, 2147483648
  %v1500 = vxor.u32 %v1484, 2147483648
  %v1501 = vxor.u32 %v1485, 2147483648
  %v1502 = vmul.f32 %v1486, 1.442695
  %v1503 = vpow.pop %v1502
  %v1504 = vmul.f32 %v1487, 1.442695
  %v1505 = vpow.pop %v1504
  %v1506 = vmul.f32 %v1488, 1.442695
  %v1507 = vpow.pop %v1506
  %v1508 = vmul.f32 %v1489, 1.442695
  %v1509 = vpow.pop %v1508
  %v1510 = vmul.f32 %v1490, 1.442695
  %v1511 = vpow.pop %v1510
  %v1512 = vmul.f32 %v1491, 1.442695
  %v1513 = vpow.pop %v1512
  %v1514 = vmul.f32 %v1492, 1.442695
  %v1515 = vpow.pop %v1514
  %v1516 = vmul.f32 %v1493, 1.442695
  %v1517 = vpow.pop %v1516
  %v1518 = vmul.f32 %v1494, 1.442695
  %v1519 = vpow.pop %v1518
  %v1520 = vmul.f32 %v1495, 1.442695
  %v1521 = vpow.pop %v1520
  %v1522 = vmul.f32 %v1496, 1.442695
  %v1523 = vpow.pop %v1522
  %v1524 = vmul.f32 %v1497, 1.442695
  %v1525 = vpow.pop %v1524
  %v1526 = vmul.f32 %v1498, 1.442695
  %v1527 = vpow.pop %v1526
  %v1528 = vmul.f32 %v1499, 1.442695
  %v1529 = vpow.pop %v1528
  %v1530 = vmul.f32 %v1500, 1.442695
  %v1531 = vpow.pop %v1530
  %v1532 = vmul.f32 %v1501, 1.442695
  %v1533 = vpow.pop %v1532
  %v1534 = vadd.f32 %v1503, 1.0
  %v1535 = vadd.f32 %v1505, 1.0
  %v1536 = vadd.f32 %v1507, 1.0
  %v1537 = vadd.f32 %v1509, 1.0
  %v1538 = vadd.f32 %v1511, 1.0
  %v1539 = vadd.f32 %v1513, 1.0
  %v1540 = vadd.f32 %v1515, 1.0
  %v1541 = vadd.f32 %v1517, 1.0
  %v1542 = vadd.f32 %v1519, 1.0
  %v1543 = vadd.f32 %v1521, 1.0
  %v1544 = vadd.f32 %v1523, 1.0
  %v1545 = vadd.f32 %v1525, 1.0
  %v1546 = vadd.f32 %v1527, 1.0
  %v1547 = vadd.f32 %v1529, 1.0
  %v1548 = vadd.f32 %v1531, 1.0
  %v1549 = vadd.f32 %v1533, 1.0
  %v1550 = vrcp.pop %v1534
  %v1551 = vmul.f32 %v1534, %v1550
  %v1552 = vsub.f32 1.0, %v1551
  %v1553 = vmul.f32 %v1550, %v1552
  %v1554 = vadd.f32 %v1550, %v1553
  %vm1555 = vweird.f32 %v1534
  %vm1556 = vweird.f32 %v1550
  %vm1557 = vmor %vm1555, %vm1556
  %v1558 = vsel %vm1557, %v1550, %v1554
  %v1559 = vand.u32 2147483647, %v1534
  %vm1560 = vcmp.eq.f32.partialorder %v1559, 8.507059e+37
  %v1561 = vand.u32 %v1534, 2147483648
  %v1562 = vor.u32 1.1754944e-38, %v1561
  %v1563 = vsel %vm1560, %v1562, %v1558
  %v1564 = vmul.f32 1.0, %v1563
  %v1565 = vrcp.pop %v1535
  %v1566 = vmul.f32 %v1535, %v1565
  %v1567 = vsub.f32 1.0, %v1566
  %v1568 = vmul.f32 %v1565, %v1567
  %v1569 = vadd.f32 %v1565, %v1568
  %vm1570 = vweird.f32 %v1535
  %vm1571 = vweird.f32 %v1565
  %vm1572 = vmor %vm1570, %vm1571
  %v1573 = vsel %vm1572, %v1565, %v1569
  %v1574 = vand.u32 2147483647, %v1535
  %vm1575 = vcmp.eq.f32.partialorder %v1574, 8.507059e+37
  %v1576 = vand.u32 %v1535, 2147483648
  %v1577 = vor.u32 1.1754944e-38, %v1576
  %v1578 = vsel %vm1575, %v1577, %v1573
  %v1579 = vmul.f32 1.0, %v1578
  %v1580 = vrcp.pop %v1536
  %v1581 = vmul.f32 %v1536, %v1580
  %v1582 = vsub.f32 1.0, %v1581
  %v1583 = vmul.f32 %v1580, %v1582
  %v1584 = vadd.f32 %v1580, %v1583
  %vm1585 = vweird.f32 %v1536
  %vm1586 = vweird.f32 %v1580
  %vm1587 = vmor %vm1585, %vm1586
  %v1588 = vsel %vm1587, %v1580, %v1584
  %v1589 = vand.u32 2147483647, %v1536
  %vm1590 = vcmp.eq.f32.partialorder %v1589, 8.507059e+37
  %v1591 = vand.u32 %v1536, 2147483648
  %v1592 = vor.u32 1.1754944e-38, %v1591
  %v1593 = vsel %vm1590, %v1592, %v1588
  %v1594 = vmul.f32 1.0, %v1593
  %v1595 = vrcp.pop %v1537
  %v1596 = vmul.f32 %v1537, %v1595
  %v1597 = vsub.f32 1.0, %v1596
  %v1598 = vmul.f32 %v1595, %v1597
  %v1599 = vadd.f32 %v1595, %v1598
  %vm1600 = vweird.f32 %v1537
  %vm1601 = vweird.f32 %v1595
  %vm1602 = vmor %vm1600, %vm1601
  %v1603 = vsel %vm1602, %v1595, %v1599
  %v1604 = vand.u32 2147483647, %v1537
  %vm1605 = vcmp.eq.f32.partialorder %v1604, 8.507059e+37
  %v1606 = vand.u32 %v1537, 2147483648
  %v1607 = vor.u32 1.1754944e-38, %v1606
  %v1608 = vsel %vm1605, %v1607, %v1603
  %v1609 = vmul.f32 1.0, %v1608
  %v1610 = vrcp.pop %v1538
  %v1611 = vmul.f32 %v1538, %v1610
  %v1612 = vsub.f32 1.0, %v1611
  %v1613 = vmul.f32 %v1610, %v1612
  %v1614 = vadd.f32 %v1610, %v1613
  %vm1615 = vweird.f32 %v1538
  %vm1616 = vweird.f32 %v1610
  %vm1617 = vmor %vm1615, %vm1616
  %v1618 = vsel %vm1617, %v1610, %v1614
  %v1619 = vand.u32 2147483647, %v1538
  %vm1620 = vcmp.eq.f32.partialorder %v1619, 8.507059e+37
  %v1621 = vand.u32 %v1538, 2147483648
  %v1622 = vor.u32 1.1754944e-38, %v1621
  %v1623 = vsel %vm1620, %v1622, %v1618
  %v1624 = vmul.f32 1.0, %v1623
  %v1625 = vrcp.pop %v1539
  %v1626 = vmul.f32 %v1539, %v1625
  %v1627 = vsub.f32 1.0, %v1626
  %v1628 = vmul.f32 %v1625, %v1627
  %v1629 = vadd.f32 %v1625, %v1628
  %vm1630 = vweird.f32 %v1539
  %vm1631 = vweird.f32 %v1625
  %vm1632 = vmor %vm1630, %vm1631
  %v1633 = vsel %vm1632, %v1625, %v1629
  %v1634 = vand.u32 2147483647, %v1539
  %vm1635 = vcmp.eq.f32.partialorder %v1634, 8.507059e+37
  %v1636 = vand.u32 %v1539, 2147483648
  %v1637 = vor.u32 1.1754944e-38, %v1636
  %v1638 = vsel %vm1635, %v1637, %v1633
  %v1639 = vmul.f32 1.0, %v1638
  %v1640 = vrcp.pop %v1540
  %v1641 = vmul.f32 %v1540, %v1640
  %v1642 = vsub.f32 1.0, %v1641
  %v1643 = vmul.f32 %v1640, %v1642
  %v1644 = vadd.f32 %v1640, %v1643
  %vm1645 = vweird.f32 %v1540
  %vm1646 = vweird.f32 %v1640
  %vm1647 = vmor %vm1645, %vm1646
  %v1648 = vsel %vm1647, %v1640, %v1644
  %v1649 = vand.u32 2147483647, %v1540
  %vm1650 = vcmp.eq.f32.partialorder %v1649, 8.507059e+37
  %v1651 = vand.u32 %v1540, 2147483648
  %v1652 = vor.u32 1.1754944e-38, %v1651
  %v1653 = vsel %vm1650, %v1652, %v1648
  %v1654 = vmul.f32 1.0, %v1653
  %v1655 = vrcp.pop %v1541
  %v1656 = vmul.f32 %v1541, %v1655
  %v1657 = vsub.f32 1.0, %v1656
  %v1658 = vmul.f32 %v1655, %v1657
  %v1659 = vadd.f32 %v1655, %v1658
  %vm1660 = vweird.f32 %v1541
  %vm1661 = vweird.f32 %v1655
  %vm1662 = vmor %vm1660, %vm1661
  %v1663 = vsel %vm1662, %v1655, %v1659
  %v1664 = vand.u32 2147483647, %v1541
  %vm1665 = vcmp.eq.f32.partialorder %v1664, 8.507059e+37
  %v1666 = vand.u32 %v1541, 2147483648
  %v1667 = vor.u32 1.1754944e-38, %v1666
  %v1668 = vsel %vm1665, %v1667, %v1663
  %v1669 = vmul.f32 1.0, %v1668
  %v1670 = vrcp.pop %v1542
  %v1671 = vmul.f32 %v1542, %v1670
  %v1672 = vsub.f32 1.0, %v1671
  %v1673 = vmul.f32 %v1670, %v1672
  %v1674 = vadd.f32 %v1670, %v1673
  %vm1675 = vweird.f32 %v1542
  %vm1676 = vweird.f32 %v1670
  %vm1677 = vmor %vm1675, %vm1676
  %v1678 = vsel %vm1677, %v1670, %v1674
  %v1679 = vand.u32 2147483647, %v1542
  %vm1680 = vcmp.eq.f32.partialorder %v1679, 8.507059e+37
  %v1681 = vand.u32 %v1542, 2147483648
  %v1682 = vor.u32 1.1754944e-38, %v1681
  %v1683 = vsel %vm1680, %v1682, %v1678
  %v1684 = vmul.f32 1.0, %v1683
  %v1685 = vrcp.pop %v1543
  %v1686 = vmul.f32 %v1543, %v1685
  %v1687 = vsub.f32 1.0, %v1686
  %v1688 = vmul.f32 %v1685, %v1687
  %v1689 = vadd.f32 %v1685, %v1688
  %vm1690 = vweird.f32 %v1543
  %vm1691 = vweird.f32 %v1685
  %vm1692 = vmor %vm1690, %vm1691
  %v1693 = vsel %vm1692, %v1685, %v1689
  %v1694 = vand.u32 2147483647, %v1543
  %vm1695 = vcmp.eq.f32.partialorder %v1694, 8.507059e+37
  %v1696 = vand.u32 %v1543, 2147483648
  %v1697 = vor.u32 1.1754944e-38, %v1696
  %v1698 = vsel %vm1695, %v1697, %v1693
  %v1699 = vmul.f32 1.0, %v1698
  %v1700 = vrcp.pop %v1544
  %v1701 = vmul.f32 %v1544, %v1700
  %v1702 = vsub.f32 1.0, %v1701
  %v1703 = vmul.f32 %v1700, %v1702
  %v1704 = vadd.f32 %v1700, %v1703
  %vm1705 = vweird.f32 %v1544
  %vm1706 = vweird.f32 %v1700
  %vm1707 = vmor %vm1705, %vm1706
  %v1708 = vsel %vm1707, %v1700, %v1704
  %v1709 = vand.u32 2147483647, %v1544
  %vm1710 = vcmp.eq.f32.partialorder %v1709, 8.507059e+37
  %v1711 = vand.u32 %v1544, 2147483648
  %v1712 = vor.u32 1.1754944e-38, %v1711
  %v1713 = vsel %vm1710, %v1712, %v1708
  %v1714 = vmul.f32 1.0, %v1713
  %v1715 = vrcp.pop %v1545
  %v1716 = vmul.f32 %v1545, %v1715
  %v1717 = vsub.f32 1.0, %v1716
  %v1718 = vmul.f32 %v1715, %v1717
  %v1719 = vadd.f32 %v1715, %v1718
  %vm1720 = vweird.f32 %v1545
  %vm1721 = vweird.f32 %v1715
  %vm1722 = vmor %vm1720, %vm1721
  %v1723 = vsel %vm1722, %v1715, %v1719
  %v1724 = vand.u32 2147483647, %v1545
  %vm1725 = vcmp.eq.f32.partialorder %v1724, 8.507059e+37
  %v1726 = vand.u32 %v1545, 2147483648
  %v1727 = vor.u32 1.1754944e-38, %v1726
  %v1728 = vsel %vm1725, %v1727, %v1723
  %v1729 = vmul.f32 1.0, %v1728
  %v1730 = vrcp.pop %v1546
  %v1731 = vmul.f32 %v1546, %v1730
  %v1732 = vsub.f32 1.0, %v1731
  %v1733 = vmul.f32 %v1730, %v1732
  %v1734 = vadd.f32 %v1730, %v1733
  %vm1735 = vweird.f32 %v1546
  %vm1736 = vweird.f32 %v1730
  %vm1737 = vmor %vm1735, %vm1736
  %v1738 = vsel %vm1737, %v1730, %v1734
  %v1739 = vand.u32 2147483647, %v1546
  %vm1740 = vcmp.eq.f32.partialorder %v1739, 8.507059e+37
  %v1741 = vand.u32 %v1546, 2147483648
  %v1742 = vor.u32 1.1754944e-38, %v1741
  %v1743 = vsel %vm1740, %v1742, %v1738
  %v1744 = vmul.f32 1.0, %v1743
  %v1745 = vrcp.pop %v1547
  %v1746 = vmul.f32 %v1547, %v1745
  %v1747 = vsub.f32 1.0, %v1746
  %v1748 = vmul.f32 %v1745, %v1747
  %v1749 = vadd.f32 %v1745, %v1748
  %vm1750 = vweird.f32 %v1547
  %vm1751 = vweird.f32 %v1745
  %vm1752 = vmor %vm1750, %vm1751
  %v1753 = vsel %vm1752, %v1745, %v1749
  %v1754 = vand.u32 2147483647, %v1547
  %vm1755 = vcmp.eq.f32.partialorder %v1754, 8.507059e+37
  %v1756 = vand.u32 %v1547, 2147483648
  %v1757 = vor.u32 1.1754944e-38, %v1756
  %v1758 = vsel %vm1755, %v1757, %v1753
  %v1759 = vmul.f32 1.0, %v1758
  %v1760 = vrcp.pop %v1548
  %v1761 = vmul.f32 %v1548, %v1760
  %v1762 = vsub.f32 1.0, %v1761
  %v1763 = vmul.f32 %v1760, %v1762
  %v1764 = vadd.f32 %v1760, %v1763
  %vm1765 = vweird.f32 %v1548
  %vm1766 = vweird.f32 %v1760
  %vm1767 = vmor %vm1765, %vm1766
  %v1768 = vsel %vm1767, %v1760, %v1764
  %v1769 = vand.u32 2147483647, %v1548
  %vm1770 = vcmp.eq.f32.partialorder %v1769, 8.507059e+37
  %v1771 = vand.u32 %v1548, 2147483648
  %v1772 = vor.u32 1.1754944e-38, %v1771
  %v1773 = vsel %vm1770, %v1772, %v1768
  %v1774 = vmul.f32 1.0, %v1773
  %v1775 = vrcp.pop %v1549
  %v1776 = vmul.f32 %v1549, %v1775
  %v1777 = vsub.f32 1.0, %v1776
  %v1778 = vmul.f32 %v1775, %v1777
  %v1779 = vadd.f32 %v1775, %v1778
  %vm1780 = vweird.f32 %v1549
  %vm1781 = vweird.f32 %v1775
  %vm1782 = vmor %vm1780, %vm1781
  %v1783 = vsel %vm1782, %v1775, %v1779
  %v1784 = vand.u32 2147483647, %v1549
  %vm1785 = vcmp.eq.f32.partialorder %v1784, 8.507059e+37
  %v1786 = vand.u32 %v1549, 2147483648
  %v1787 = vor.u32 1.1754944e-38, %v1786
  %v1788 = vsel %vm1785, %v1787, %v1783
  %v1789 = vmul.f32 1.0, %v1788
  %1790 = vst [vmem:[%s10] sm:$0xff] %v1564
  %1791 = vst [vmem:[%s10 + $0x8] sm:$0xff] %v1579
  %1792 = vst [vmem:[%s10 + $0x10] sm:$0xff] %v1594
  %1793 = vst [vmem:[%s10 + $0x18] sm:$0xff] %v1609
  %1794 = vst [vmem:[%s10 + $0x20] sm:$0xff] %v1624
  %1795 = vst [vmem:[%s10 + $0x28] sm:$0xff] %v1639
  %1796 = vst [vmem:[%s10 + $0x30] sm:$0xff] %v1654
  %1797 = vst [vmem:[%s10 + $0x38] sm:$0xff] %v1669
  %1798 = vst [vmem:[%s10 + $0x40] sm:$0xff] %v1684
  %1799 = vst [vmem:[%s10 + $0x48] sm:$0xff] %v1699
  %1800 = vst [vmem:[%s10 + $0x50] sm:$0xff] %v1714
  %1801 = vst [vmem:[%s10 + $0x58] sm:$0xff] %v1729
  %1802 = vst [vmem:[%s10 + $0x60] sm:$0xff] %v1744
  %1803 = vst [vmem:[%s10 + $0x68] sm:$0xff] %v1759
  %1804 = vst [vmem:[%s10 + $0x70] sm:$0xff] %v1774
  %1805 = vst [vmem:[%s10 + $0x78] sm:$0xff] %v1789
  // Predicated region
  $region42: #{forward.1} parent=0 // pred_check
    _
  $region43: #{forward.1} parent=0 // pred_check_branch
    %1807 = sbr.rel (0) target = $region45
  $region44: #{forward.1} parent=0 // pred_region
    _
  $region45: #{forward.1} parent=0 // pred_fallthru
    _
  // Predicated region
  $region46: #{forward.1} parent=0 // pred_check
    _
  $region47: #{forward.1} parent=0 // pred_check_branch
    %1809 = sbr.rel (0) target = $region49
  $region48: #{forward.1} parent=0 // pred_region
    _
  $region49: #{forward.1} parent=0 // pred_fallthru
    _

</llo_original>
